<compile_context>
chip_gen: v7x
topology: tpu7x:2x2x1
jax: 0.10.0
libtpu: 0.0.40
codegen_flags: <defaults>
</compile_context>

<pallas_src>
import jax
import jax.numpy as jnp
from jax.experimental import pallas as pl
from jax.experimental.pallas import tpu as pltpu
import numpy as np


def _lstm_kernel(xproj_ref, whh1_ref, w2_ref, b2_ref,
                 wl1_ref, bl1_ref, wl2_ref, bl2_ref,
                 out_seq_ref, out_cyto_ref):
    """Whole recurrence runs inside one kernel invocation (no grid).

    xproj_ref : (T, B, 4*H1)  precomputed  x_t @ W_ih1^T + b_ih1 + b_hh1
    whh1_ref  : (H1, 4*H1)    layer-1 recurrent weight (pre-transposed)
    w2_ref    : (H1+H2, 4*H2) fused layer-2 weight  [W_ih2^T ; W_hh2^T]
    b2_ref    : (B, 4*H2)     layer-2 bias, pre-broadcast over batch
    wl1_ref   : (H2, n_output1), bl1_ref: (1, n_output1)
    wl2_ref   : (H2, n_output2), bl2_ref: (1, n_output2)
    out_seq_ref : (T*B, n_output1)   rows ordered [t0b0, t0b1, t1b0, ...]
    out_cyto_ref: (B, n_output2)
    """
    T = xproj_ref.shape[0]
    B = xproj_ref.shape[1]
    H1 = whh1_ref.shape[0]
    H2 = wl1_ref.shape[0]

    whh1 = whh1_ref[...]
    w2 = w2_ref[...]
    b2 = b2_ref[...]          # already (B, 4*H2): no per-step broadcast

    def gates_to_hc(gates, c, H):
        # PyTorch LSTMCell gate order: i, f, g, o.
        # Apply the transcendentals to the whole (B, 4H) vreg, then slice.
        sig = jax.nn.sigmoid(gates)
        tnh = jnp.tanh(gates)
        i_g = sig[:, 0 * H:1 * H]
        f_g = sig[:, 1 * H:2 * H]
        g_g = tnh[:, 2 * H:3 * H]
        o_g = sig[:, 3 * H:4 * H]
        c_new = f_g * c + i_g * g_g
        h_new = o_g * jnp.tanh(c_new)
        return h_new, c_new

    h1 = jnp.zeros((B, H1), jnp.float32)
    c1 = jnp.zeros((B, H1), jnp.float32)
    h2 = jnp.zeros((B, H2), jnp.float32)
    c2 = jnp.zeros((B, H2), jnp.float32)

    h2_hist = []
    # Fully unrolled recurrence (T is static and small); all state stays in vregs.
    for t in range(T):
        gates1 = (jnp.dot(h1, whh1, preferred_element_type=jnp.float32)
                  + xproj_ref[t])
        h1, c1 = gates_to_hc(gates1, c1, H1)

        hcat = jnp.concatenate([h1, h2], axis=1)          # (B, H1+H2)
        gates2 = (jnp.dot(hcat, w2, preferred_element_type=jnp.float32)
                  + b2)
        h2, c2 = gates_to_hc(gates2, c2, H2)
        h2_hist.append(h2)

    # linear1 over the whole h2 history in a single matmul + single store.
    hist2d = jnp.concatenate(h2_hist, axis=0)             # (T*B, H2)
    out_seq_ref[...] = (jnp.dot(hist2d, wl1_ref[...],
                                preferred_element_type=jnp.float32)
                        + bl1_ref[...])

    # output_cyto = linear2(h_t2_final)
    out_cyto_ref[...] = (jnp.dot(h2, wl2_ref[...],
                                 preferred_element_type=jnp.float32)
                         + bl2_ref[...])


def lstm_forward(x, params):
    """x: (B, T) float32 (each time step is the scalar column -> n_input=1).

    Returns (output_cyto (B, n_output2), outputs (B, T, n_output1)) exactly
    like the PyTorch module with future=0.
    """
    B, T = x.shape
    n_input = 1

    # Pre-transpose weights so the kernel computes x @ W; fold the two biases.
    wih1_t = params["lstm1_w_ih"].T                    # (n_input, 4*H1)
    whh1_t = params["lstm1_w_hh"].T                    # (H1, 4*H1)
    b1 = (params["lstm1_b_ih"] + params["lstm1_b_hh"]).reshape(1, -1)
    wih2_t = params["lstm2_w_ih"].T                    # (H1, 4*H2)
    whh2_t = params["lstm2_w_hh"].T                    # (H2, 4*H2)
    b2 = (params["lstm2_b_ih"] + params["lstm2_b_hh"]).reshape(1, -1)
    wl1_t = params["linear1_w"].T                      # (H2, n_output1)
    bl1 = params["linear1_b"].reshape(1, -1)
    wl2_t = params["linear2_w"].T                      # (H2, n_output2)
    bl2 = params["linear2_b"].reshape(1, -1)

    H1 = whh1_t.shape[0]
    H2 = whh2_t.shape[0]
    n_output1 = wl1_t.shape[1]
    n_output2 = wl2_t.shape[1]

    # Hoist the layer-1 input projection (and its bias) out of the recurrence.
    x_tm = jnp.transpose(x, (1, 0)).reshape(T, B, n_input).astype(jnp.float32)
    xproj = jnp.einsum("tbi,ig->tbg", x_tm, wih1_t) + b1       # (T, B, 4*H1)

    # Fuse layer-2's two dots into one: [h1|h2] @ [W_ih2^T ; W_hh2^T].
    w2_fused = jnp.concatenate([wih2_t, whh2_t], axis=0)       # (H1+H2, 4*H2)
    # Pre-broadcast the layer-2 bias once (avoid re-emitted broadcasts per step).
    b2b = jnp.broadcast_to(b2, (B, 4 * H2))

    vmem = pl.BlockSpec(memory_space=pltpu.MemorySpace.VMEM)
    out_seq, out_cyto = pl.pallas_call(
        _lstm_kernel,
        out_shape=(jax.ShapeDtypeStruct((T * B, n_output1), jnp.float32),
                   jax.ShapeDtypeStruct((B, n_output2), jnp.float32)),
        in_specs=[vmem] * 8,
        out_specs=(vmem, vmem),
    )(xproj, whh1_t, w2_fused, b2b, wl1_t, bl1, wl2_t, bl2)

    # rows of out_seq are [t, b] -> reshape to (T, B, n1) and move to (B, T, n1)
    outputs = out_seq.reshape(T, B, n_output1).transpose(1, 0, 2)
    return out_cyto, outputs


def _reference_forward(x, params):
    """Pure-JAX reference mirroring the PyTorch forward (future=0)."""
    B, T = x.shape

    def cell(x_t, h, c, w_ih, w_hh, b_ih, b_hh):
        gates = x_t @ w_ih.T + b_ih + h @ w_hh.T + b_hh
        H = h.shape[1]
        i = jax.nn.sigmoid(gates[:, 0 * H:1 * H])
        f = jax.nn.sigmoid(gates[:, 1 * H:2 * H])
        g = jnp.tanh(gates[:, 2 * H:3 * H])
        o = jax.nn.sigmoid(gates[:, 3 * H:4 * H])
        c2 = f * c + i * g
        return o * jnp.tanh(c2), c2

    H1 = params["lstm1_w_hh"].shape[1]
    H2 = params["lstm2_w_hh"].shape[1]
    h1 = jnp.zeros((B, H1), jnp.float32)
    c1 = jnp.zeros((B, H1), jnp.float32)
    h2 = jnp.zeros((B, H2), jnp.float32)
    c2 = jnp.zeros((B, H2), jnp.float32)
    outs = []
    for t in range(T):
        x_t = x[:, t:t + 1]
        h1, c1 = cell(x_t, h1, c1, params["lstm1_w_ih"], params["lstm1_w_hh"],
                      params["lstm1_b_ih"], params["lstm1_b_hh"])
        h2, c2 = cell(h1, h2, c2, params["lstm2_w_ih"], params["lstm2_w_hh"],
                      params["lstm2_b_ih"], params["lstm2_b_hh"])
        outs.append(h2 @ params["linear1_w"].T + params["linear1_b"])
    output_cyto = h2 @ params["linear2_w"].T + params["linear2_b"]
    return output_cyto, jnp.stack(outs, axis=1)


def _init_params(key, n_input, n_hidden1, n_hidden2, n_output1, n_output2):
    """Deterministic init matching PyTorch shapes (uniform(-1/sqrt(H), 1/sqrt(H)))."""
    def unif(k, shape, bound):
        return jax.random.uniform(k, shape, jnp.float32, -bound, bound)

    ks = jax.random.split(key, 12)
    s1 = 1.0 / np.sqrt(n_hidden1)
    s2 = 1.0 / np.sqrt(n_hidden2)
    return {
        "lstm1_w_ih": unif(ks[0], (4 * n_hidden1, n_input), s1),
        "lstm1_w_hh": unif(ks[1], (4 * n_hidden1, n_hidden1), s1),
        "lstm1_b_ih": unif(ks[2], (4 * n_hidden1,), s1),
        "lstm1_b_hh": unif(ks[3], (4 * n_hidden1,), s1),
        "lstm2_w_ih": unif(ks[4], (4 * n_hidden2, n_hidden1), s2),
        "lstm2_w_hh": unif(ks[5], (4 * n_hidden2, n_hidden2), s2),
        "lstm2_b_ih": unif(ks[6], (4 * n_hidden2,), s2),
        "lstm2_b_hh": unif(ks[7], (4 * n_hidden2,), s2),
        "linear1_w": unif(ks[8], (n_output1, n_hidden2), s2),
        "linear1_b": unif(ks[9], (n_output1,), s2),
        "linear2_w": unif(ks[10], (n_output2, n_hidden2), s2),
        "linear2_b": unif(ks[11], (n_output2,), s2),
    }


if __name__ == "__main__":
    # x.chunk(x.size(1), dim=1) => each step is a (B, 1) column => n_input = 1
    B, T = 2, 8
    n_input, n_hidden1, n_hidden2, n_output1, n_output2 = 1, 32, 32, 4, 3

    key = jax.random.PRNGKey(0)
    k_x, k_p = jax.random.split(key)
    x = jax.random.normal(k_x, (B, T), jnp.float32)
    params = _init_params(k_p, n_input, n_hidden1, n_hidden2, n_output1, n_output2)

    out_cyto, outputs = lstm_forward(x, params)
    jax.block_until_ready((out_cyto, outputs))

    ref_cyto, ref_outputs = _reference_forward(x, params)
    np.testing.assert_allclose(np.asarray(out_cyto), np.asarray(ref_cyto),
                               rtol=1e-5, atol=1e-5)
    np.testing.assert_allclose(np.asarray(outputs), np.asarray(ref_outputs),
                               rtol=1e-5, atol=1e-5)

    assert out_cyto.shape == (B, n_output2)
    assert outputs.shape == (B, T, n_output1)
    # TODO(synk): `future > 0` branch feeds h_t2 back into lstm1 (only valid when
    # n_input == n_hidden2); not exercised here since forward defaults to future=0.
    print("KERNEL_OK")
</pallas_src>

<mosaic_0001>
module attributes {stable_mosaic.version = 11 : i64} {
  func.func @_lstm_kernel(%arg0: memref<8x2x128xf32, #tpu.memory_space<vmem>>, %arg1: memref<32x128xf32, #tpu.memory_space<vmem>>, %arg2: memref<64x128xf32, #tpu.memory_space<vmem>>, %arg3: memref<2x128xf32, #tpu.memory_space<vmem>>, %arg4: memref<32x4xf32, #tpu.memory_space<vmem>>, %arg5: memref<1x4xf32, #tpu.memory_space<vmem>>, %arg6: memref<32x3xf32, #tpu.memory_space<vmem>>, %arg7: memref<1x3xf32, #tpu.memory_space<vmem>>, %arg8: memref<16x4xf32, #tpu.memory_space<vmem>>, %arg9: memref<2x3xf32, #tpu.memory_space<vmem>>) attributes {dimension_semantics = [], scalar_prefetch = 0 : i64, scratch_operands = 0 : i64, tpu.core_type = #tpu.core_type<tc>} {
    %c0 = arith.constant 0 : index
    %c0_0 = arith.constant 0 : index
    %0 = vector.load %arg1[%c0, %c0_0] : memref<32x128xf32, #tpu.memory_space<vmem>>, vector<32x128xf32>
    %c0_1 = arith.constant 0 : index
    %c0_2 = arith.constant 0 : index
    %1 = vector.load %arg2[%c0_1, %c0_2] : memref<64x128xf32, #tpu.memory_space<vmem>>, vector<64x128xf32>
    %c0_3 = arith.constant 0 : index
    %c0_4 = arith.constant 0 : index
    %2 = vector.load %arg3[%c0_3, %c0_4] : memref<2x128xf32, #tpu.memory_space<vmem>>, vector<2x128xf32>
    %cst = arith.constant 0.000000e+00 : f32
    %3 = vector.broadcast %cst : f32 to vector<2x32xf32>
    %cst_5 = arith.constant 0.000000e+00 : f32
    %4 = vector.broadcast %cst_5 : f32 to vector<2x32xf32>
    %cst_6 = arith.constant 0.000000e+00 : f32
    %5 = vector.broadcast %cst_6 : f32 to vector<2x32xf32>
    %cst_7 = arith.constant 0.000000e+00 : f32
    %6 = vector.broadcast %cst_7 : f32 to vector<2x32xf32>
    %cst_8 = arith.constant dense<0.000000e+00> : vector<2x128xf32>
    %7 = tpu.matmul %3, %0, %cst_8 {dimension_numbers = #tpu.dot_dimension_numbers<[1], [0], [0], [1], [0, 0, 1, 1], [], []>} : vector<2x32xf32>, vector<32x128xf32>, vector<2x128xf32> -> vector<2x128xf32>
    %c0_9 = arith.constant 0 : index
    %c0_10 = arith.constant 0 : index
    %c0_11 = arith.constant 0 : index
    %8 = vector.load %arg0[%c0_9, %c0_10, %c0_11] : memref<8x2x128xf32, #tpu.memory_space<vmem>>, vector<1x2x128xf32>
    %9 = vector.shape_cast %8 : vector<1x2x128xf32> to vector<2x128xf32>
    %10 = arith.addf %7, %9 : vector<2x128xf32>
    %11 = arith.negf %10 : vector<2x128xf32>
    %12 = math.exp %11 : vector<2x128xf32>
    %cst_12 = arith.constant 1.000000e+00 : f32
    %13 = vector.broadcast %cst_12 : f32 to vector<2x128xf32>
    %14 = arith.addf %13, %12 : vector<2x128xf32>
    %15 = arith.divf %13, %14 : vector<2x128xf32>
    %16 = math.tanh %10 : vector<2x128xf32>
    %17 = vector.extract_strided_slice %15 {offsets = [0, 0], sizes = [2, 32], strides = [1, 1]} : vector<2x128xf32> to vector<2x32xf32>
    %18 = vector.extract_strided_slice %15 {offsets = [0, 32], sizes = [2, 32], strides = [1, 1]} : vector<2x128xf32> to vector<2x32xf32>
    %19 = vector.extract_strided_slice %16 {offsets = [0, 64], sizes = [2, 32], strides = [1, 1]} : vector<2x128xf32> to vector<2x32xf32>
    %20 = vector.extract_strided_slice %15 {offsets = [0, 96], sizes = [2, 32], strides = [1, 1]} : vector<2x128xf32> to vector<2x32xf32>
    %21 = arith.mulf %18, %4 : vector<2x32xf32>
    %22 = arith.mulf %17, %19 : vector<2x32xf32>
    %23 = arith.addf %21, %22 : vector<2x32xf32>
    %24 = math.tanh %23 : vector<2x32xf32>
    %25 = arith.mulf %20, %24 : vector<2x32xf32>
    %26 = tpu.concatenate %25, %5 in 1 : vector<2x32xf32>, vector<2x32xf32> -> vector<2x64xf32>
    %cst_13 = arith.constant dense<0.000000e+00> : vector<2x128xf32>
    %27 = tpu.matmul %26, %1, %cst_13 {dimension_numbers = #tpu.dot_dimension_numbers<[1], [0], [0], [1], [0, 0, 1, 1], [], []>} : vector<2x64xf32>, vector<64x128xf32>, vector<2x128xf32> -> vector<2x128xf32>
    %28 = arith.addf %27, %2 : vector<2x128xf32>
    %29 = arith.negf %28 : vector<2x128xf32>
    %30 = math.exp %29 : vector<2x128xf32>
    %cst_14 = arith.constant 1.000000e+00 : f32
    %31 = vector.broadcast %cst_14 : f32 to vector<2x128xf32>
    %32 = arith.addf %31, %30 : vector<2x128xf32>
    %33 = arith.divf %31, %32 : vector<2x128xf32>
    %34 = math.tanh %28 : vector<2x128xf32>
    %35 = vector.extract_strided_slice %33 {offsets = [0, 0], sizes = [2, 32], strides = [1, 1]} : vector<2x128xf32> to vector<2x32xf32>
    %36 = vector.extract_strided_slice %33 {offsets = [0, 32], sizes = [2, 32], strides = [1, 1]} : vector<2x128xf32> to vector<2x32xf32>
    %37 = vector.extract_strided_slice %34 {offsets = [0, 64], sizes = [2, 32], strides = [1, 1]} : vector<2x128xf32> to vector<2x32xf32>
    %38 = vector.extract_strided_slice %33 {offsets = [0, 96], sizes = [2, 32], strides = [1, 1]} : vector<2x128xf32> to vector<2x32xf32>
    %39 = arith.mulf %36, %6 : vector<2x32xf32>
    %40 = arith.mulf %35, %37 : vector<2x32xf32>
    %41 = arith.addf %39, %40 : vector<2x32xf32>
    %42 = math.tanh %41 : vector<2x32xf32>
    %43 = arith.mulf %38, %42 : vector<2x32xf32>
    %cst_15 = arith.constant dense<0.000000e+00> : vector<2x128xf32>
    %44 = tpu.matmul %25, %0, %cst_15 {dimension_numbers = #tpu.dot_dimension_numbers<[1], [0], [0], [1], [0, 0, 1, 1], [], []>} : vector<2x32xf32>, vector<32x128xf32>, vector<2x128xf32> -> vector<2x128xf32>
    %c1 = arith.constant 1 : index
    %c0_16 = arith.constant 0 : index
    %c0_17 = arith.constant 0 : index
    %45 = vector.load %arg0[%c1, %c0_16, %c0_17] : memref<8x2x128xf32, #tpu.memory_space<vmem>>, vector<1x2x128xf32>
    %46 = vector.shape_cast %45 : vector<1x2x128xf32> to vector<2x128xf32>
    %47 = arith.addf %44, %46 : vector<2x128xf32>
    %48 = arith.negf %47 : vector<2x128xf32>
    %49 = math.exp %48 : vector<2x128xf32>
    %cst_18 = arith.constant 1.000000e+00 : f32
    %50 = vector.broadcast %cst_18 : f32 to vector<2x128xf32>
    %51 = arith.addf %50, %49 : vector<2x128xf32>
    %52 = arith.divf %50, %51 : vector<2x128xf32>
    %53 = math.tanh %47 : vector<2x128xf32>
    %54 = vector.extract_strided_slice %52 {offsets = [0, 0], sizes = [2, 32], strides = [1, 1]} : vector<2x128xf32> to vector<2x32xf32>
    %55 = vector.extract_strided_slice %52 {offsets = [0, 32], sizes = [2, 32], strides = [1, 1]} : vector<2x128xf32> to vector<2x32xf32>
    %56 = vector.extract_strided_slice %53 {offsets = [0, 64], sizes = [2, 32], strides = [1, 1]} : vector<2x128xf32> to vector<2x32xf32>
    %57 = vector.extract_strided_slice %52 {offsets = [0, 96], sizes = [2, 32], strides = [1, 1]} : vector<2x128xf32> to vector<2x32xf32>
    %58 = arith.mulf %55, %23 : vector<2x32xf32>
    %59 = arith.mulf %54, %56 : vector<2x32xf32>
    %60 = arith.addf %58, %59 : vector<2x32xf32>
    %61 = math.tanh %60 : vector<2x32xf32>
    %62 = arith.mulf %57, %61 : vector<2x32xf32>
    %63 = tpu.concatenate %62, %43 in 1 : vector<2x32xf32>, vector<2x32xf32> -> vector<2x64xf32>
    %cst_19 = arith.constant dense<0.000000e+00> : vector<2x128xf32>
    %64 = tpu.matmul %63, %1, %cst_19 {dimension_numbers = #tpu.dot_dimension_numbers<[1], [0], [0], [1], [0, 0, 1, 1], [], []>} : vector<2x64xf32>, vector<64x128xf32>, vector<2x128xf32> -> vector<2x128xf32>
    %65 = arith.addf %64, %2 : vector<2x128xf32>
    %66 = arith.negf %65 : vector<2x128xf32>
    %67 = math.exp %66 : vector<2x128xf32>
    %cst_20 = arith.constant 1.000000e+00 : f32
    %68 = vector.broadcast %cst_20 : f32 to vector<2x128xf32>
    %69 = arith.addf %68, %67 : vector<2x128xf32>
    %70 = arith.divf %68, %69 : vector<2x128xf32>
    %71 = math.tanh %65 : vector<2x128xf32>
    %72 = vector.extract_strided_slice %70 {offsets = [0, 0], sizes = [2, 32], strides = [1, 1]} : vector<2x128xf32> to vector<2x32xf32>
    %73 = vector.extract_strided_slice %70 {offsets = [0, 32], sizes = [2, 32], strides = [1, 1]} : vector<2x128xf32> to vector<2x32xf32>
    %74 = vector.extract_strided_slice %71 {offsets = [0, 64], sizes = [2, 32], strides = [1, 1]} : vector<2x128xf32> to vector<2x32xf32>
    %75 = vector.extract_strided_slice %70 {offsets = [0, 96], sizes = [2, 32], strides = [1, 1]} : vector<2x128xf32> to vector<2x32xf32>
    %76 = arith.mulf %73, %41 : vector<2x32xf32>
    %77 = arith.mulf %72, %74 : vector<2x32xf32>
    %78 = arith.addf %76, %77 : vector<2x32xf32>
    %79 = math.tanh %78 : vector<2x32xf32>
    %80 = arith.mulf %75, %79 : vector<2x32xf32>
    %cst_21 = arith.constant dense<0.000000e+00> : vector<2x128xf32>
    %81 = tpu.matmul %62, %0, %cst_21 {dimension_numbers = #tpu.dot_dimension_numbers<[1], [0], [0], [1], [0, 0, 1, 1], [], []>} : vector<2x32xf32>, vector<32x128xf32>, vector<2x128xf32> -> vector<2x128xf32>
    %c2 = arith.constant 2 : index
    %c0_22 = arith.constant 0 : index
    %c0_23 = arith.constant 0 : index
    %82 = vector.load %arg0[%c2, %c0_22, %c0_23] : memref<8x2x128xf32, #tpu.memory_space<vmem>>, vector<1x2x128xf32>
    %83 = vector.shape_cast %82 : vector<1x2x128xf32> to vector<2x128xf32>
    %84 = arith.addf %81, %83 : vector<2x128xf32>
    %85 = arith.negf %84 : vector<2x128xf32>
    %86 = math.exp %85 : vector<2x128xf32>
    %cst_24 = arith.constant 1.000000e+00 : f32
    %87 = vector.broadcast %cst_24 : f32 to vector<2x128xf32>
    %88 = arith.addf %87, %86 : vector<2x128xf32>
    %89 = arith.divf %87, %88 : vector<2x128xf32>
    %90 = math.tanh %84 : vector<2x128xf32>
    %91 = vector.extract_strided_slice %89 {offsets = [0, 0], sizes = [2, 32], strides = [1, 1]} : vector<2x128xf32> to vector<2x32xf32>
    %92 = vector.extract_strided_slice %89 {offsets = [0, 32], sizes = [2, 32], strides = [1, 1]} : vector<2x128xf32> to vector<2x32xf32>
    %93 = vector.extract_strided_slice %90 {offsets = [0, 64], sizes = [2, 32], strides = [1, 1]} : vector<2x128xf32> to vector<2x32xf32>
    %94 = vector.extract_strided_slice %89 {offsets = [0, 96], sizes = [2, 32], strides = [1, 1]} : vector<2x128xf32> to vector<2x32xf32>
    %95 = arith.mulf %92, %60 : vector<2x32xf32>
    %96 = arith.mulf %91, %93 : vector<2x32xf32>
    %97 = arith.addf %95, %96 : vector<2x32xf32>
    %98 = math.tanh %97 : vector<2x32xf32>
    %99 = arith.mulf %94, %98 : vector<2x32xf32>
    %100 = tpu.concatenate %99, %80 in 1 : vector<2x32xf32>, vector<2x32xf32> -> vector<2x64xf32>
    %cst_25 = arith.constant dense<0.000000e+00> : vector<2x128xf32>
    %101 = tpu.matmul %100, %1, %cst_25 {dimension_numbers = #tpu.dot_dimension_numbers<[1], [0], [0], [1], [0, 0, 1, 1], [], []>} : vector<2x64xf32>, vector<64x128xf32>, vector<2x128xf32> -> vector<2x128xf32>
    %102 = arith.addf %101, %2 : vector<2x128xf32>
    %103 = arith.negf %102 : vector<2x128xf32>
    %104 = math.exp %103 : vector<2x128xf32>
    %cst_26 = arith.constant 1.000000e+00 : f32
    %105 = vector.broadcast %cst_26 : f32 to vector<2x128xf32>
    %106 = arith.addf %105, %104 : vector<2x128xf32>
    %107 = arith.divf %105, %106 : vector<2x128xf32>
    %108 = math.tanh %102 : vector<2x128xf32>
    %109 = vector.extract_strided_slice %107 {offsets = [0, 0], sizes = [2, 32], strides = [1, 1]} : vector<2x128xf32> to vector<2x32xf32>
    %110 = vector.extract_strided_slice %107 {offsets = [0, 32], sizes = [2, 32], strides = [1, 1]} : vector<2x128xf32> to vector<2x32xf32>
    %111 = vector.extract_strided_slice %108 {offsets = [0, 64], sizes = [2, 32], strides = [1, 1]} : vector<2x128xf32> to vector<2x32xf32>
    %112 = vector.extract_strided_slice %107 {offsets = [0, 96], sizes = [2, 32], strides = [1, 1]} : vector<2x128xf32> to vector<2x32xf32>
    %113 = arith.mulf %110, %78 : vector<2x32xf32>
    %114 = arith.mulf %109, %111 : vector<2x32xf32>
    %115 = arith.addf %113, %114 : vector<2x32xf32>
    %116 = math.tanh %115 : vector<2x32xf32>
    %117 = arith.mulf %112, %116 : vector<2x32xf32>
    %cst_27 = arith.constant dense<0.000000e+00> : vector<2x128xf32>
    %118 = tpu.matmul %99, %0, %cst_27 {dimension_numbers = #tpu.dot_dimension_numbers<[1], [0], [0], [1], [0, 0, 1, 1], [], []>} : vector<2x32xf32>, vector<32x128xf32>, vector<2x128xf32> -> vector<2x128xf32>
    %c3 = arith.constant 3 : index
    %c0_28 = arith.constant 0 : index
    %c0_29 = arith.constant 0 : index
    %119 = vector.load %arg0[%c3, %c0_28, %c0_29] : memref<8x2x128xf32, #tpu.memory_space<vmem>>, vector<1x2x128xf32>
    %120 = vector.shape_cast %119 : vector<1x2x128xf32> to vector<2x128xf32>
    %121 = arith.addf %118, %120 : vector<2x128xf32>
    %122 = arith.negf %121 : vector<2x128xf32>
    %123 = math.exp %122 : vector<2x128xf32>
    %cst_30 = arith.constant 1.000000e+00 : f32
    %124 = vector.broadcast %cst_30 : f32 to vector<2x128xf32>
    %125 = arith.addf %124, %123 : vector<2x128xf32>
    %126 = arith.divf %124, %125 : vector<2x128xf32>
    %127 = math.tanh %121 : vector<2x128xf32>
    %128 = vector.extract_strided_slice %126 {offsets = [0, 0], sizes = [2, 32], strides = [1, 1]} : vector<2x128xf32> to vector<2x32xf32>
    %129 = vector.extract_strided_slice %126 {offsets = [0, 32], sizes = [2, 32], strides = [1, 1]} : vector<2x128xf32> to vector<2x32xf32>
    %130 = vector.extract_strided_slice %127 {offsets = [0, 64], sizes = [2, 32], strides = [1, 1]} : vector<2x128xf32> to vector<2x32xf32>
    %131 = vector.extract_strided_slice %126 {offsets = [0, 96], sizes = [2, 32], strides = [1, 1]} : vector<2x128xf32> to vector<2x32xf32>
    %132 = arith.mulf %129, %97 : vector<2x32xf32>
    %133 = arith.mulf %128, %130 : vector<2x32xf32>
    %134 = arith.addf %132, %133 : vector<2x32xf32>
    %135 = math.tanh %134 : vector<2x32xf32>
    %136 = arith.mulf %131, %135 : vector<2x32xf32>
    %137 = tpu.concatenate %136, %117 in 1 : vector<2x32xf32>, vector<2x32xf32> -> vector<2x64xf32>
    %cst_31 = arith.constant dense<0.000000e+00> : vector<2x128xf32>
    %138 = tpu.matmul %137, %1, %cst_31 {dimension_numbers = #tpu.dot_dimension_numbers<[1], [0], [0], [1], [0, 0, 1, 1], [], []>} : vector<2x64xf32>, vector<64x128xf32>, vector<2x128xf32> -> vector<2x128xf32>
    %139 = arith.addf %138, %2 : vector<2x128xf32>
    %140 = arith.negf %139 : vector<2x128xf32>
    %141 = math.exp %140 : vector<2x128xf32>
    %cst_32 = arith.constant 1.000000e+00 : f32
    %142 = vector.broadcast %cst_32 : f32 to vector<2x128xf32>
    %143 = arith.addf %142, %141 : vector<2x128xf32>
    %144 = arith.divf %142, %143 : vector<2x128xf32>
    %145 = math.tanh %139 : vector<2x128xf32>
    %146 = vector.extract_strided_slice %144 {offsets = [0, 0], sizes = [2, 32], strides = [1, 1]} : vector<2x128xf32> to vector<2x32xf32>
    %147 = vector.extract_strided_slice %144 {offsets = [0, 32], sizes = [2, 32], strides = [1, 1]} : vector<2x128xf32> to vector<2x32xf32>
    %148 = vector.extract_strided_slice %145 {offsets = [0, 64], sizes = [2, 32], strides = [1, 1]} : vector<2x128xf32> to vector<2x32xf32>
    %149 = vector.extract_strided_slice %144 {offsets = [0, 96], sizes = [2, 32], strides = [1, 1]} : vector<2x128xf32> to vector<2x32xf32>
    %150 = arith.mulf %147, %115 : vector<2x32xf32>
    %151 = arith.mulf %146, %148 : vector<2x32xf32>
    %152 = arith.addf %150, %151 : vector<2x32xf32>
    %153 = math.tanh %152 : vector<2x32xf32>
    %154 = arith.mulf %149, %153 : vector<2x32xf32>
    %cst_33 = arith.constant dense<0.000000e+00> : vector<2x128xf32>
    %155 = tpu.matmul %136, %0, %cst_33 {dimension_numbers = #tpu.dot_dimension_numbers<[1], [0], [0], [1], [0, 0, 1, 1], [], []>} : vector<2x32xf32>, vector<32x128xf32>, vector<2x128xf32> -> vector<2x128xf32>
    %c4 = arith.constant 4 : index
    %c0_34 = arith.constant 0 : index
    %c0_35 = arith.constant 0 : index
    %156 = vector.load %arg0[%c4, %c0_34, %c0_35] : memref<8x2x128xf32, #tpu.memory_space<vmem>>, vector<1x2x128xf32>
    %157 = vector.shape_cast %156 : vector<1x2x128xf32> to vector<2x128xf32>
    %158 = arith.addf %155, %157 : vector<2x128xf32>
    %159 = arith.negf %158 : vector<2x128xf32>
    %160 = math.exp %159 : vector<2x128xf32>
    %cst_36 = arith.constant 1.000000e+00 : f32
    %161 = vector.broadcast %cst_36 : f32 to vector<2x128xf32>
    %162 = arith.addf %161, %160 : vector<2x128xf32>
    %163 = arith.divf %161, %162 : vector<2x128xf32>
    %164 = math.tanh %158 : vector<2x128xf32>
    %165 = vector.extract_strided_slice %163 {offsets = [0, 0], sizes = [2, 32], strides = [1, 1]} : vector<2x128xf32> to vector<2x32xf32>
    %166 = vector.extract_strided_slice %163 {offsets = [0, 32], sizes = [2, 32], strides = [1, 1]} : vector<2x128xf32> to vector<2x32xf32>
    %167 = vector.extract_strided_slice %164 {offsets = [0, 64], sizes = [2, 32], strides = [1, 1]} : vector<2x128xf32> to vector<2x32xf32>
    %168 = vector.extract_strided_slice %163 {offsets = [0, 96], sizes = [2, 32], strides = [1, 1]} : vector<2x128xf32> to vector<2x32xf32>
    %169 = arith.mulf %166, %134 : vector<2x32xf32>
    %170 = arith.mulf %165, %167 : vector<2x32xf32>
    %171 = arith.addf %169, %170 : vector<2x32xf32>
    %172 = math.tanh %171 : vector<2x32xf32>
    %173 = arith.mulf %168, %172 : vector<2x32xf32>
    %174 = tpu.concatenate %173, %154 in 1 : vector<2x32xf32>, vector<2x32xf32> -> vector<2x64xf32>
    %cst_37 = arith.constant dense<0.000000e+00> : vector<2x128xf32>
    %175 = tpu.matmul %174, %1, %cst_37 {dimension_numbers = #tpu.dot_dimension_numbers<[1], [0], [0], [1], [0, 0, 1, 1], [], []>} : vector<2x64xf32>, vector<64x128xf32>, vector<2x128xf32> -> vector<2x128xf32>
    %176 = arith.addf %175, %2 : vector<2x128xf32>
    %177 = arith.negf %176 : vector<2x128xf32>
    %178 = math.exp %177 : vector<2x128xf32>
    %cst_38 = arith.constant 1.000000e+00 : f32
    %179 = vector.broadcast %cst_38 : f32 to vector<2x128xf32>
    %180 = arith.addf %179, %178 : vector<2x128xf32>
    %181 = arith.divf %179, %180 : vector<2x128xf32>
    %182 = math.tanh %176 : vector<2x128xf32>
    %183 = vector.extract_strided_slice %181 {offsets = [0, 0], sizes = [2, 32], strides = [1, 1]} : vector<2x128xf32> to vector<2x32xf32>
    %184 = vector.extract_strided_slice %181 {offsets = [0, 32], sizes = [2, 32], strides = [1, 1]} : vector<2x128xf32> to vector<2x32xf32>
    %185 = vector.extract_strided_slice %182 {offsets = [0, 64], sizes = [2, 32], strides = [1, 1]} : vector<2x128xf32> to vector<2x32xf32>
    %186 = vector.extract_strided_slice %181 {offsets = [0, 96], sizes = [2, 32], strides = [1, 1]} : vector<2x128xf32> to vector<2x32xf32>
    %187 = arith.mulf %184, %152 : vector<2x32xf32>
    %188 = arith.mulf %183, %185 : vector<2x32xf32>
    %189 = arith.addf %187, %188 : vector<2x32xf32>
    %190 = math.tanh %189 : vector<2x32xf32>
    %191 = arith.mulf %186, %190 : vector<2x32xf32>
    %cst_39 = arith.constant dense<0.000000e+00> : vector<2x128xf32>
    %192 = tpu.matmul %173, %0, %cst_39 {dimension_numbers = #tpu.dot_dimension_numbers<[1], [0], [0], [1], [0, 0, 1, 1], [], []>} : vector<2x32xf32>, vector<32x128xf32>, vector<2x128xf32> -> vector<2x128xf32>
    %c5 = arith.constant 5 : index
    %c0_40 = arith.constant 0 : index
    %c0_41 = arith.constant 0 : index
    %193 = vector.load %arg0[%c5, %c0_40, %c0_41] : memref<8x2x128xf32, #tpu.memory_space<vmem>>, vector<1x2x128xf32>
    %194 = vector.shape_cast %193 : vector<1x2x128xf32> to vector<2x128xf32>
    %195 = arith.addf %192, %194 : vector<2x128xf32>
    %196 = arith.negf %195 : vector<2x128xf32>
    %197 = math.exp %196 : vector<2x128xf32>
    %cst_42 = arith.constant 1.000000e+00 : f32
    %198 = vector.broadcast %cst_42 : f32 to vector<2x128xf32>
    %199 = arith.addf %198, %197 : vector<2x128xf32>
    %200 = arith.divf %198, %199 : vector<2x128xf32>
    %201 = math.tanh %195 : vector<2x128xf32>
    %202 = vector.extract_strided_slice %200 {offsets = [0, 0], sizes = [2, 32], strides = [1, 1]} : vector<2x128xf32> to vector<2x32xf32>
    %203 = vector.extract_strided_slice %200 {offsets = [0, 32], sizes = [2, 32], strides = [1, 1]} : vector<2x128xf32> to vector<2x32xf32>
    %204 = vector.extract_strided_slice %201 {offsets = [0, 64], sizes = [2, 32], strides = [1, 1]} : vector<2x128xf32> to vector<2x32xf32>
    %205 = vector.extract_strided_slice %200 {offsets = [0, 96], sizes = [2, 32], strides = [1, 1]} : vector<2x128xf32> to vector<2x32xf32>
    %206 = arith.mulf %203, %171 : vector<2x32xf32>
    %207 = arith.mulf %202, %204 : vector<2x32xf32>
    %208 = arith.addf %206, %207 : vector<2x32xf32>
    %209 = math.tanh %208 : vector<2x32xf32>
    %210 = arith.mulf %205, %209 : vector<2x32xf32>
    %211 = tpu.concatenate %210, %191 in 1 : vector<2x32xf32>, vector<2x32xf32> -> vector<2x64xf32>
    %cst_43 = arith.constant dense<0.000000e+00> : vector<2x128xf32>
    %212 = tpu.matmul %211, %1, %cst_43 {dimension_numbers = #tpu.dot_dimension_numbers<[1], [0], [0], [1], [0, 0, 1, 1], [], []>} : vector<2x64xf32>, vector<64x128xf32>, vector<2x128xf32> -> vector<2x128xf32>
    %213 = arith.addf %212, %2 : vector<2x128xf32>
    %214 = arith.negf %213 : vector<2x128xf32>
    %215 = math.exp %214 : vector<2x128xf32>
    %cst_44 = arith.constant 1.000000e+00 : f32
    %216 = vector.broadcast %cst_44 : f32 to vector<2x128xf32>
    %217 = arith.addf %216, %215 : vector<2x128xf32>
    %218 = arith.divf %216, %217 : vector<2x128xf32>
    %219 = math.tanh %213 : vector<2x128xf32>
    %220 = vector.extract_strided_slice %218 {offsets = [0, 0], sizes = [2, 32], strides = [1, 1]} : vector<2x128xf32> to vector<2x32xf32>
    %221 = vector.extract_strided_slice %218 {offsets = [0, 32], sizes = [2, 32], strides = [1, 1]} : vector<2x128xf32> to vector<2x32xf32>
    %222 = vector.extract_strided_slice %219 {offsets = [0, 64], sizes = [2, 32], strides = [1, 1]} : vector<2x128xf32> to vector<2x32xf32>
    %223 = vector.extract_strided_slice %218 {offsets = [0, 96], sizes = [2, 32], strides = [1, 1]} : vector<2x128xf32> to vector<2x32xf32>
    %224 = arith.mulf %221, %189 : vector<2x32xf32>
    %225 = arith.mulf %220, %222 : vector<2x32xf32>
    %226 = arith.addf %224, %225 : vector<2x32xf32>
    %227 = math.tanh %226 : vector<2x32xf32>
    %228 = arith.mulf %223, %227 : vector<2x32xf32>
    %cst_45 = arith.constant dense<0.000000e+00> : vector<2x128xf32>
    %229 = tpu.matmul %210, %0, %cst_45 {dimension_numbers = #tpu.dot_dimension_numbers<[1], [0], [0], [1], [0, 0, 1, 1], [], []>} : vector<2x32xf32>, vector<32x128xf32>, vector<2x128xf32> -> vector<2x128xf32>
    %c6 = arith.constant 6 : index
    %c0_46 = arith.constant 0 : index
    %c0_47 = arith.constant 0 : index
    %230 = vector.load %arg0[%c6, %c0_46, %c0_47] : memref<8x2x128xf32, #tpu.memory_space<vmem>>, vector<1x2x128xf32>
    %231 = vector.shape_cast %230 : vector<1x2x128xf32> to vector<2x128xf32>
    %232 = arith.addf %229, %231 : vector<2x128xf32>
    %233 = arith.negf %232 : vector<2x128xf32>
    %234 = math.exp %233 : vector<2x128xf32>
    %cst_48 = arith.constant 1.000000e+00 : f32
    %235 = vector.broadcast %cst_48 : f32 to vector<2x128xf32>
    %236 = arith.addf %235, %234 : vector<2x128xf32>
    %237 = arith.divf %235, %236 : vector<2x128xf32>
    %238 = math.tanh %232 : vector<2x128xf32>
    %239 = vector.extract_strided_slice %237 {offsets = [0, 0], sizes = [2, 32], strides = [1, 1]} : vector<2x128xf32> to vector<2x32xf32>
    %240 = vector.extract_strided_slice %237 {offsets = [0, 32], sizes = [2, 32], strides = [1, 1]} : vector<2x128xf32> to vector<2x32xf32>
    %241 = vector.extract_strided_slice %238 {offsets = [0, 64], sizes = [2, 32], strides = [1, 1]} : vector<2x128xf32> to vector<2x32xf32>
    %242 = vector.extract_strided_slice %237 {offsets = [0, 96], sizes = [2, 32], strides = [1, 1]} : vector<2x128xf32> to vector<2x32xf32>
    %243 = arith.mulf %240, %208 : vector<2x32xf32>
    %244 = arith.mulf %239, %241 : vector<2x32xf32>
    %245 = arith.addf %243, %244 : vector<2x32xf32>
    %246 = math.tanh %245 : vector<2x32xf32>
    %247 = arith.mulf %242, %246 : vector<2x32xf32>
    %248 = tpu.concatenate %247, %228 in 1 : vector<2x32xf32>, vector<2x32xf32> -> vector<2x64xf32>
    %cst_49 = arith.constant dense<0.000000e+00> : vector<2x128xf32>
    %249 = tpu.matmul %248, %1, %cst_49 {dimension_numbers = #tpu.dot_dimension_numbers<[1], [0], [0], [1], [0, 0, 1, 1], [], []>} : vector<2x64xf32>, vector<64x128xf32>, vector<2x128xf32> -> vector<2x128xf32>
    %250 = arith.addf %249, %2 : vector<2x128xf32>
    %251 = arith.negf %250 : vector<2x128xf32>
    %252 = math.exp %251 : vector<2x128xf32>
    %cst_50 = arith.constant 1.000000e+00 : f32
    %253 = vector.broadcast %cst_50 : f32 to vector<2x128xf32>
    %254 = arith.addf %253, %252 : vector<2x128xf32>
    %255 = arith.divf %253, %254 : vector<2x128xf32>
    %256 = math.tanh %250 : vector<2x128xf32>
    %257 = vector.extract_strided_slice %255 {offsets = [0, 0], sizes = [2, 32], strides = [1, 1]} : vector<2x128xf32> to vector<2x32xf32>
    %258 = vector.extract_strided_slice %255 {offsets = [0, 32], sizes = [2, 32], strides = [1, 1]} : vector<2x128xf32> to vector<2x32xf32>
    %259 = vector.extract_strided_slice %256 {offsets = [0, 64], sizes = [2, 32], strides = [1, 1]} : vector<2x128xf32> to vector<2x32xf32>
    %260 = vector.extract_strided_slice %255 {offsets = [0, 96], sizes = [2, 32], strides = [1, 1]} : vector<2x128xf32> to vector<2x32xf32>
    %261 = arith.mulf %258, %226 : vector<2x32xf32>
    %262 = arith.mulf %257, %259 : vector<2x32xf32>
    %263 = arith.addf %261, %262 : vector<2x32xf32>
    %264 = math.tanh %263 : vector<2x32xf32>
    %265 = arith.mulf %260, %264 : vector<2x32xf32>
    %cst_51 = arith.constant dense<0.000000e+00> : vector<2x128xf32>
    %266 = tpu.matmul %247, %0, %cst_51 {dimension_numbers = #tpu.dot_dimension_numbers<[1], [0], [0], [1], [0, 0, 1, 1], [], []>} : vector<2x32xf32>, vector<32x128xf32>, vector<2x128xf32> -> vector<2x128xf32>
    %c7 = arith.constant 7 : index
    %c0_52 = arith.constant 0 : index
    %c0_53 = arith.constant 0 : index
    %267 = vector.load %arg0[%c7, %c0_52, %c0_53] : memref<8x2x128xf32, #tpu.memory_space<vmem>>, vector<1x2x128xf32>
    %268 = vector.shape_cast %267 : vector<1x2x128xf32> to vector<2x128xf32>
    %269 = arith.addf %266, %268 : vector<2x128xf32>
    %270 = arith.negf %269 : vector<2x128xf32>
    %271 = math.exp %270 : vector<2x128xf32>
    %cst_54 = arith.constant 1.000000e+00 : f32
    %272 = vector.broadcast %cst_54 : f32 to vector<2x128xf32>
    %273 = arith.addf %272, %271 : vector<2x128xf32>
    %274 = arith.divf %272, %273 : vector<2x128xf32>
    %275 = math.tanh %269 : vector<2x128xf32>
    %276 = vector.extract_strided_slice %274 {offsets = [0, 0], sizes = [2, 32], strides = [1, 1]} : vector<2x128xf32> to vector<2x32xf32>
    %277 = vector.extract_strided_slice %274 {offsets = [0, 32], sizes = [2, 32], strides = [1, 1]} : vector<2x128xf32> to vector<2x32xf32>
    %278 = vector.extract_strided_slice %275 {offsets = [0, 64], sizes = [2, 32], strides = [1, 1]} : vector<2x128xf32> to vector<2x32xf32>
    %279 = vector.extract_strided_slice %274 {offsets = [0, 96], sizes = [2, 32], strides = [1, 1]} : vector<2x128xf32> to vector<2x32xf32>
    %280 = arith.mulf %277, %245 : vector<2x32xf32>
    %281 = arith.mulf %276, %278 : vector<2x32xf32>
    %282 = arith.addf %280, %281 : vector<2x32xf32>
    %283 = math.tanh %282 : vector<2x32xf32>
    %284 = arith.mulf %279, %283 : vector<2x32xf32>
    %285 = tpu.concatenate %284, %265 in 1 : vector<2x32xf32>, vector<2x32xf32> -> vector<2x64xf32>
    %cst_55 = arith.constant dense<0.000000e+00> : vector<2x128xf32>
    %286 = tpu.matmul %285, %1, %cst_55 {dimension_numbers = #tpu.dot_dimension_numbers<[1], [0], [0], [1], [0, 0, 1, 1], [], []>} : vector<2x64xf32>, vector<64x128xf32>, vector<2x128xf32> -> vector<2x128xf32>
    %287 = arith.addf %286, %2 : vector<2x128xf32>
    %288 = arith.negf %287 : vector<2x128xf32>
    %289 = math.exp %288 : vector<2x128xf32>
    %cst_56 = arith.constant 1.000000e+00 : f32
    %290 = vector.broadcast %cst_56 : f32 to vector<2x128xf32>
    %291 = arith.addf %290, %289 : vector<2x128xf32>
    %292 = arith.divf %290, %291 : vector<2x128xf32>
    %293 = math.tanh %287 : vector<2x128xf32>
    %294 = vector.extract_strided_slice %292 {offsets = [0, 0], sizes = [2, 32], strides = [1, 1]} : vector<2x128xf32> to vector<2x32xf32>
    %295 = vector.extract_strided_slice %292 {offsets = [0, 32], sizes = [2, 32], strides = [1, 1]} : vector<2x128xf32> to vector<2x32xf32>
    %296 = vector.extract_strided_slice %293 {offsets = [0, 64], sizes = [2, 32], strides = [1, 1]} : vector<2x128xf32> to vector<2x32xf32>
    %297 = vector.extract_strided_slice %292 {offsets = [0, 96], sizes = [2, 32], strides = [1, 1]} : vector<2x128xf32> to vector<2x32xf32>
    %298 = arith.mulf %295, %263 : vector<2x32xf32>
    %299 = arith.mulf %294, %296 : vector<2x32xf32>
    %300 = arith.addf %298, %299 : vector<2x32xf32>
    %301 = math.tanh %300 : vector<2x32xf32>
    %302 = arith.mulf %297, %301 : vector<2x32xf32>
    %303 = tpu.concatenate %43, %80, %117, %154, %191, %228, %265, %302 in 0 : vector<2x32xf32>, vector<2x32xf32>, vector<2x32xf32>, vector<2x32xf32>, vector<2x32xf32>, vector<2x32xf32>, vector<2x32xf32>, vector<2x32xf32> -> vector<16x32xf32>
    %c0_57 = arith.constant 0 : index
    %c0_58 = arith.constant 0 : index
    %304 = vector.load %arg4[%c0_57, %c0_58] : memref<32x4xf32, #tpu.memory_space<vmem>>, vector<32x4xf32>
    %cst_59 = arith.constant dense<0.000000e+00> : vector<16x4xf32>
    %305 = tpu.matmul %303, %304, %cst_59 {dimension_numbers = #tpu.dot_dimension_numbers<[1], [0], [0], [1], [0, 0, 1, 1], [], []>} : vector<16x32xf32>, vector<32x4xf32>, vector<16x4xf32> -> vector<16x4xf32>
    %c0_60 = arith.constant 0 : index
    %c0_61 = arith.constant 0 : index
    %306 = vector.load %arg5[%c0_60, %c0_61] : memref<1x4xf32, #tpu.memory_space<vmem>>, vector<1x4xf32>
    %307 = vector.broadcast %306 : vector<1x4xf32> to vector<16x4xf32>
    %308 = arith.addf %305, %307 : vector<16x4xf32>
    %c0_62 = arith.constant 0 : index
    %c0_63 = arith.constant 0 : index
    %309 = vector.load %arg8[%c0_62, %c0_63] : memref<16x4xf32, #tpu.memory_space<vmem>>, vector<16x4xf32>
    tpu.vector_store %arg8[%c0_62, %c0_63], %308 {strides = array<i32>} : memref<16x4xf32, #tpu.memory_space<vmem>>, vector<16x4xf32>,
    %c0_64 = arith.constant 0 : index
    %c0_65 = arith.constant 0 : index
    %310 = vector.load %arg6[%c0_64, %c0_65] : memref<32x3xf32, #tpu.memory_space<vmem>>, vector<32x3xf32>
    %cst_66 = arith.constant dense<0.000000e+00> : vector<2x3xf32>
    %311 = tpu.matmul %302, %310, %cst_66 {dimension_numbers = #tpu.dot_dimension_numbers<[1], [0], [0], [1], [0, 0, 1, 1], [], []>} : vector<2x32xf32>, vector<32x3xf32>, vector<2x3xf32> -> vector<2x3xf32>
    %c0_67 = arith.constant 0 : index
    %c0_68 = arith.constant 0 : index
    %312 = vector.load %arg7[%c0_67, %c0_68] : memref<1x3xf32, #tpu.memory_space<vmem>>, vector<1x3xf32>
    %313 = vector.broadcast %312 : vector<1x3xf32> to vector<2x3xf32>
    %314 = arith.addf %311, %313 : vector<2x3xf32>
    %c0_69 = arith.constant 0 : index
    %c0_70 = arith.constant 0 : index
    %315 = vector.load %arg9[%c0_69, %c0_70] : memref<2x3xf32, #tpu.memory_space<vmem>>, vector<2x3xf32>
    tpu.vector_store %arg9[%c0_69, %c0_70], %314 {strides = array<i32>} : memref<2x3xf32, #tpu.memory_space<vmem>>, vector<2x3xf32>,
    return
  }
}

</mosaic_0001>

<llo_original>
// kernel: tpu_custom_call.1
$region0: #{tpu_custom_call.1}
  #allocation0 [shape = 'u32[]', space=smem, size = 0x4, offset = 0x4, fixed_abs, tag = 'smem constant byte address 0x4 - core index']
  #allocation1 [shape = 'u32[144,128]{1,0:T(1,128)}', space=vmem, size = 0x12000, scoped, tag = 'internal scratch']
  %s0 = inlined_call_operand.hbm [shape: f32[8,2,128], index: 0, kind: input, shape index: {}]
  %s1 = inlined_call_operand.hbm [shape: f32[32,128], index: 1, kind: input, shape index: {}]
  %s2 = inlined_call_operand.vmem [shape: f32[64,128], index: 2, kind: input, shape index: {}]
  %s3 = inlined_call_operand.vmem [shape: f32[2,128], index: 3, kind: input, shape index: {}]
  %s4 = inlined_call_operand.vmem [shape: f32[32,4], index: 4, kind: input, shape index: {}]
  %s5 = inlined_call_operand.vmem [shape: f32[1,4], index: 5, kind: input, shape index: {}]
  %s6 = inlined_call_operand.vmem [shape: f32[32,3], index: 6, kind: input, shape index: {}]
  %s7 = inlined_call_operand.vmem [shape: f32[1,3], index: 7, kind: input, shape index: {}]
  %s8 = inlined_call_operand.vmem [shape: f32[16,4], index: 8, kind: output, shape index: {0}]
  %s9 = inlined_call_operand.hbm [shape: f32[2,3], index: 9, kind: output, shape index: {1}]
  %10 = xla_tuple %s8, %s9
  %s11 = sld [smem:[#allocation0]]
  $region58: #{tpu_custom_call.1} parent=0
    _
  %s13 = ssub.s32 1, %s11
  %s14 = scalar_select 0, %s13, %s11
  $region1: #{tpu_custom_call.1} parent=0
    #allocation2 [shape = 'u8[8192]{0}', space=vmem, size = 0x2000, scoped, tag = 'input window, operand 0, single buffered']
    #allocation3 [shape = 's32[1]{0}', space=sflag, size = 0x4, scoped, tag = 'scoped memory for tpu_custom_call.1']
    #allocation4 [shape = 's32[1]{0}', space=sflag, size = 0x4, scoped, tag = 'scoped memory for tpu_custom_call.1']
    #allocation5 [shape = 'u8[16384]{0}', space=vmem, size = 0x4000, scoped, tag = 'input window, operand 1, single buffered']
    #allocation6 [shape = 's32[1]{0}', space=sflag, size = 0x4, scoped, tag = 'scoped memory for tpu_custom_call.1']
    #allocation7 [shape = 'u8[1024]{0}', space=vmem, size = 0x400, scoped, tag = 'output window, operand 1, single buffered']
    %15 = vsyncpa [#allocation3], 0
    %16 = vsyncpa [#allocation6], 0
    %17 = vsyncpa [#allocation4], 0
    // Predicated region
    $region2: #{tpu_custom_call.1} parent=1 // pred_check
      _
    $region3: #{tpu_custom_call.1} parent=1 // pred_check_branch
      %19 = sbr.rel (0) target = $region5
    $region4: #{tpu_custom_call.1} parent=1 // pred_region
      %s21 = ssub.s32 256, 256
      %22 = vsyncadd [#allocation3], %s21
      %s23 = sshll.u32 [#allocation2], 4
      %s24 = int_to_ptr.vmem [resolvable:$true] %s23
      %29 = dma.hbm_to_vmem [thread:$0]  %s0, 256, %s24, [#allocation3], 32, 32, 2
    $region5: #{tpu_custom_call.1} parent=1 // pred_fallthru
      _
    // Predicated region
    $region6: #{tpu_custom_call.1} parent=1 // pred_check
      _
    $region7: #{tpu_custom_call.1} parent=1 // pred_check_branch
      %31 = sbr.rel (0) target = $region9
    $region8: #{tpu_custom_call.1} parent=1 // pred_region
      %s33 = ssub.s32 512, 512
      %34 = vsyncadd [#allocation6], %s33
      %s35 = sshll.u32 [#allocation5], 4
      %s36 = int_to_ptr.vmem [resolvable:$true] %s35
      %41 = dma.hbm_to_vmem [thread:$0]  %s1, 512, %s36, [#allocation6], 128, 128, 8
    $region9: #{tpu_custom_call.1} parent=1 // pred_fallthru
      _
    // Predicated region
    $region10: #{tpu_custom_call.1} parent=1 // pred_check
      _
    $region11: #{tpu_custom_call.1} parent=1 // pred_check_branch
      %43 = sbr.rel (0) target = $region13
    $region12: #{tpu_custom_call.1} parent=1 // pred_region
      _
    $region13: #{tpu_custom_call.1} parent=1 // pred_fallthru
      _
    // Predicated region
    $region14: #{tpu_custom_call.1} parent=1 // pred_check
      _
    $region15: #{tpu_custom_call.1} parent=1 // pred_check_branch
      %45 = sbr.rel (0) target = $region17
    $region16: #{tpu_custom_call.1} parent=1 // pred_region
      _
    $region17: #{tpu_custom_call.1} parent=1 // pred_fallthru
      _
    // Predicated region
    $region18: #{tpu_custom_call.1} parent=1 // pred_check
      _
    $region19: #{tpu_custom_call.1} parent=1 // pred_check_branch
      %47 = sbr.rel (0) target = $region21
    $region20: #{tpu_custom_call.1} parent=1 // pred_region
      _
    $region21: #{tpu_custom_call.1} parent=1 // pred_fallthru
      _
    // Predicated region
    $region22: #{tpu_custom_call.1} parent=1 // pred_check
      _
    $region23: #{tpu_custom_call.1} parent=1 // pred_check_branch
      %49 = sbr.rel (0) target = $region25
    $region24: #{tpu_custom_call.1} parent=1 // pred_region
      _
    $region25: #{tpu_custom_call.1} parent=1 // pred_fallthru
      _
    // Predicated region
    $region26: #{tpu_custom_call.1} parent=1 // pred_check
      _
    $region27: #{tpu_custom_call.1} parent=1 // pred_check_branch
      %51 = sbr.rel (0) target = $region29
    $region28: #{tpu_custom_call.1} parent=1 // pred_region
      _
    $region29: #{tpu_custom_call.1} parent=1 // pred_fallthru
      _
    // Predicated region
    $region30: #{tpu_custom_call.1} parent=1 // pred_check
      _
    $region31: #{tpu_custom_call.1} parent=1 // pred_check_branch
      %53 = sbr.rel (0) target = $region33
    $region32: #{tpu_custom_call.1} parent=1 // pred_region
      _
    $region33: #{tpu_custom_call.1} parent=1 // pred_fallthru
      _
    // Predicated region
    $region34: #{tpu_custom_call.1} parent=1 // pred_check
      _
    $region35: #{tpu_custom_call.1} parent=1 // pred_check_branch
      %55 = sbr.rel (0) target = $region37
    $region36: #{tpu_custom_call.1} parent=1 // pred_region
      %56 = dma.done [#allocation3], 256
    $region37: #{tpu_custom_call.1} parent=1 // pred_fallthru
      _
    // Predicated region
    $region38: #{tpu_custom_call.1} parent=1 // pred_check
      _
    $region39: #{tpu_custom_call.1} parent=1 // pred_check_branch
      %58 = sbr.rel (0) target = $region41
    $region40: #{tpu_custom_call.1} parent=1 // pred_region
      %59 = dma.done [#allocation6], 512
    $region41: #{tpu_custom_call.1} parent=1 // pred_fallthru
      _
    %v60 = vld [vmem:[#allocation5] sm:$0xff]
    %v61 = vld [vmem:[#allocation5 + $0x8] sm:$0xff]
    %v62 = vld [vmem:[#allocation5 + $0x10] sm:$0xff]
    %v63 = vld [vmem:[#allocation5 + $0x18] sm:$0xff]
    %v64 = vld [vmem:[%s2] sm:$0xff]
    %v65 = vld [vmem:[%s2 + $0x8] sm:$0xff]
    %v66 = vld [vmem:[%s2 + $0x10] sm:$0xff]
    %v67 = vld [vmem:[%s2 + $0x18] sm:$0xff]
    %v68 = vld [vmem:[%s2 + $0x20] sm:$0xff]
    %v69 = vld [vmem:[%s2 + $0x28] sm:$0xff]
    %v70 = vld [vmem:[%s2 + $0x30] sm:$0xff]
    %v71 = vld [vmem:[%s2 + $0x38] sm:$0xff]
    %v72 = vld [vmem:[%s3] sm:$0x3]
    %v73 = vld [vmem:[#allocation2] sm:$0x3]
    %vm74 = vcmask 261120
    %v76 = vsel %vm74, 0.0, 0
    %78 = vmatprep.subr.mxu0 0.0
    %79 = vmatpush1.msra.mxu0 %v60
    %80 = vmatprep.subr.mxu0 0.0
    %81 = vmatpush1.msra.mxu0 %v61
    %82 = vmatprep.subr.mxu0 0.0
    %83 = vmatpush1.msra.mxu0 %v62
    %84 = vmatprep.subr.mxu0 0.0
    %85 = vmatpush1.msra.mxu0 %v63
    %86 = vmatprep.subr.mxu0 0.0
    %87 = vmatpush1.msra.mxu0 0.0
    %88 = vmatprep.subr.mxu0 0.0
    %89 = vmatpush1.msra.mxu0 0.0
    %90 = vmatprep.subr.mxu0 0.0
    %91 = vmatpush1.msra.mxu0 0.0
    %92 = vmatprep.subr.mxu0 0.0
    %93 = vmatpush1.msra.mxu0 0.0
    %94 = vmatprep.subr.mxu0 0.0
    %95 = vmatpush1.msra.mxu0 0.0
    %96 = vmatprep.subr.mxu0 0.0
    %97 = vmatpush1.msra.mxu0 0.0
    %98 = vmatprep.subr.mxu0 0.0
    %99 = vmatpush1.msra.mxu0 0.0
    %100 = vmatprep.subr.mxu0 0.0
    %101 = vmatpush1.msra.mxu0 0.0
    %102 = vmatprep.subr.mxu0 0.0
    %103 = vmatpush1.msra.mxu0 0.0
    %104 = vmatprep.subr.mxu0 0.0
    %105 = vmatpush1.msra.mxu0 0.0
    %106 = vmatprep.subr.mxu0 0.0
    %107 = vmatpush1.msra.mxu0 0.0
    %108 = vmatprep.subr.mxu0 0.0
    %109 = vmatpush1.msra.mxu0 0.0
    %110 = vmatprep.subr.mxu0 0.0
    %111 = vmatpush1.msra.mxu0 0.0
    %112 = vmatprep.subr.mxu0 0.0
    %113 = vmatpush1.msra.mxu0 0.0
    %114 = vmatprep.subr.mxu0 0.0
    %115 = vmatpush1.msra.mxu0 0.0
    %116 = vmatprep.subr.mxu0 0.0
    %117 = vmatpush1.msra.mxu0 0.0
    %118 = vmatprep.subr.mxu0 0.0
    %119 = vmatpush1.msra.mxu0 0.0
    %120 = vmatprep.subr.mxu0 0.0
    %121 = vmatpush1.msra.mxu0 0.0
    %122 = vmatprep.subr.mxu0 0.0
    %123 = vmatpush1.msra.mxu0 0.0
    %124 = vmatprep.subr.mxu0 0.0
    %125 = vmatpush1.msra.mxu0 0.0
    %126 = vmatprep.subr.mxu0 0.0
    %127 = vmatpush1.msra.mxu0 0.0
    %128 = vmatprep.subr.mxu0 0.0
    %129 = vmatpush1.msra.mxu0 0.0
    %130 = vmatprep.subr.mxu0 0.0
    %131 = vmatpush1.msra.mxu0 0.0
    %132 = vmatprep.subr.mxu0 0.0
    %133 = vmatpush1.msra.mxu0 0.0
    %134 = vmatprep.subr.mxu0 0.0
    %135 = vmatpush1.msra.mxu0 0.0
    %136 = vmatprep.subr.mxu0 0.0
    %137 = vmatpush1.msra.mxu0 0.0
    %138 = vmatprep.subr.mxu0 0.0
    %139 = vmatpush1.msra.mxu0 0.0
    %140 = vmatprep.subr.mxu0 0.0
    %141 = vmatpush1.msra.mxu0 0.0
    %142 = vmatprep.mubr.f32.mxu0 0.0
    %143 = vmatmul.mubr.f32.gmra.mrb[0].mxu0 %v76
    %v144 = vpop.f32.mrb[0].mxu0
    %v145 = vadd.f32 %v73, %v144
    %v146 = vpop.f32.mrb[0].mxu0
    %147 = vdwg.mxu0
    %v148 = vxor.u32 %v145, 2147483648
    %v149 = vmul.f32 %v148, 1.442695
    %v150 = vpow.pop %v149
    %v151 = vadd.f32 %v150, 1.0
    %v152 = vrcp.pop %v151
    %v153 = vmul.f32 1.0, %v152
    %v154 = vtanh.pop %v145
    %v155 = vmul.f32 %v153, 0.0
    %157 = vrot.lane.b32.xlu0 %v154, 64
    %v158 = vpop.permute.xlu0 %157
    %v160 = vmul.f32 %v153, %v158
    %162 = vrot.lane.b32.xlu0 %v160, 32
    %v163 = vpop.permute.xlu0 %162
    %v165 = vadd.f32 %v155, %v163
    %v166 = vtanh.pop %v165
    %168 = vrot.lane.b32.xlu0 %v166, 64
    %v169 = vpop.permute.xlu0 %168
    %v171 = vmul.f32 %v153, %v169
    %173 = vrot.lane.b32.xlu0 %v171, 32
    %v174 = vpop.permute.xlu0 %173
    %v176 = vsel %vm74, %v174, 0.0
    %vm177 = vcmask 523264
    %v179 = vsel %vm177, %v176, 0
    %181 = vmatprep.subr.mxu0 0.0
    %182 = vmatpush1.msra.mxu0 %v64
    %183 = vmatprep.subr.mxu0 0.0
    %184 = vmatpush1.msra.mxu0 %v65
    %185 = vmatprep.subr.mxu0 0.0
    %186 = vmatpush1.msra.mxu0 %v66
    %187 = vmatprep.subr.mxu0 0.0
    %188 = vmatpush1.msra.mxu0 %v67
    %189 = vmatprep.subr.mxu0 0.0
    %190 = vmatpush1.msra.mxu0 %v68
    %191 = vmatprep.subr.mxu0 0.0
    %192 = vmatpush1.msra.mxu0 %v69
    %193 = vmatprep.subr.mxu0 0.0
    %194 = vmatpush1.msra.mxu0 %v70
    %195 = vmatprep.subr.mxu0 0.0
    %196 = vmatpush1.msra.mxu0 %v71
    %197 = vmatprep.subr.mxu0 0.0
    %198 = vmatpush1.msra.mxu0 0.0
    %199 = vmatprep.subr.mxu0 0.0
    %200 = vmatpush1.msra.mxu0 0.0
    %201 = vmatprep.subr.mxu0 0.0
    %202 = vmatpush1.msra.mxu0 0.0
    %203 = vmatprep.subr.mxu0 0.0
    %204 = vmatpush1.msra.mxu0 0.0
    %205 = vmatprep.subr.mxu0 0.0
    %206 = vmatpush1.msra.mxu0 0.0
    %207 = vmatprep.subr.mxu0 0.0
    %208 = vmatpush1.msra.mxu0 0.0
    %209 = vmatprep.subr.mxu0 0.0
    %210 = vmatpush1.msra.mxu0 0.0
    %211 = vmatprep.subr.mxu0 0.0
    %212 = vmatpush1.msra.mxu0 0.0
    %213 = vmatprep.subr.mxu0 0.0
    %214 = vmatpush1.msra.mxu0 0.0
    %215 = vmatprep.subr.mxu0 0.0
    %216 = vmatpush1.msra.mxu0 0.0
    %217 = vmatprep.subr.mxu0 0.0
    %218 = vmatpush1.msra.mxu0 0.0
    %219 = vmatprep.subr.mxu0 0.0
    %220 = vmatpush1.msra.mxu0 0.0
    %221 = vmatprep.subr.mxu0 0.0
    %222 = vmatpush1.msra.mxu0 0.0
    %223 = vmatprep.subr.mxu0 0.0
    %224 = vmatpush1.msra.mxu0 0.0
    %225 = vmatprep.subr.mxu0 0.0
    %226 = vmatpush1.msra.mxu0 0.0
    %227 = vmatprep.subr.mxu0 0.0
    %228 = vmatpush1.msra.mxu0 0.0
    %229 = vmatprep.subr.mxu0 0.0
    %230 = vmatpush1.msra.mxu0 0.0
    %231 = vmatprep.subr.mxu0 0.0
    %232 = vmatpush1.msra.mxu0 0.0
    %233 = vmatprep.subr.mxu0 0.0
    %234 = vmatpush1.msra.mxu0 0.0
    %235 = vmatprep.subr.mxu0 0.0
    %236 = vmatpush1.msra.mxu0 0.0
    %237 = vmatprep.subr.mxu0 0.0
    %238 = vmatpush1.msra.mxu0 0.0
    %239 = vmatprep.subr.mxu0 0.0
    %240 = vmatpush1.msra.mxu0 0.0
    %241 = vmatprep.subr.mxu0 0.0
    %242 = vmatpush1.msra.mxu0 0.0
    %243 = vmatprep.subr.mxu0 0.0
    %244 = vmatpush1.msra.mxu0 0.0
    %245 = vmatprep.mubr.f32.mxu0 0.0
    %246 = vmatmul.mubr.f32.gmra.mrb[0].mxu0 %v179
    %v247 = vpop.f32.mrb[0].mxu0
    %v248 = vadd.f32 %v72, %v247
    %v249 = vpop.f32.mrb[0].mxu0
    %250 = vdwg.mxu0
    %v251 = vxor.u32 %v248, 2147483648
    %v252 = vmul.f32 %v251, 1.442695
    %v253 = vpow.pop %v252
    %v254 = vadd.f32 %v253, 1.0
    %v255 = vrcp.pop %v254
    %v256 = vmul.f32 1.0, %v255
    %v257 = vtanh.pop %v248
    %v258 = vmul.f32 %v256, 0.0
    %260 = vrot.lane.b32.xlu0 %v257, 64
    %v261 = vpop.permute.xlu0 %260
    %v263 = vmul.f32 %v256, %v261
    %265 = vrot.lane.b32.xlu0 %v263, 32
    %v266 = vpop.permute.xlu0 %265
    %v268 = vadd.f32 %v258, %v266
    %v269 = vtanh.pop %v268
    %271 = vrot.lane.b32.xlu0 %v269, 64
    %v272 = vpop.permute.xlu0 %271
    %v274 = vmul.f32 %v256, %v272
    %s275 = scalar_lea.vmem [#allocation2], 2
    %v276 = vld [vmem:[%s275] sm:$0x3]
    %v277 = vsel %vm74, %v174, 0
    %279 = vmatprep.subr.mxu0 0.0
    %280 = vmatpush1.msra.mxu0 %v60
    %281 = vmatprep.subr.mxu0 0.0
    %282 = vmatpush1.msra.mxu0 %v61
    %283 = vmatprep.subr.mxu0 0.0
    %284 = vmatpush1.msra.mxu0 %v62
    %285 = vmatprep.subr.mxu0 0.0
    %286 = vmatpush1.msra.mxu0 %v63
    %287 = vmatprep.subr.mxu0 0.0
    %288 = vmatpush1.msra.mxu0 0.0
    %289 = vmatprep.subr.mxu0 0.0
    %290 = vmatpush1.msra.mxu0 0.0
    %291 = vmatprep.subr.mxu0 0.0
    %292 = vmatpush1.msra.mxu0 0.0
    %293 = vmatprep.subr.mxu0 0.0
    %294 = vmatpush1.msra.mxu0 0.0
    %295 = vmatprep.subr.mxu0 0.0
    %296 = vmatpush1.msra.mxu0 0.0
    %297 = vmatprep.subr.mxu0 0.0
    %298 = vmatpush1.msra.mxu0 0.0
    %299 = vmatprep.subr.mxu0 0.0
    %300 = vmatpush1.msra.mxu0 0.0
    %301 = vmatprep.subr.mxu0 0.0
    %302 = vmatpush1.msra.mxu0 0.0
    %303 = vmatprep.subr.mxu0 0.0
    %304 = vmatpush1.msra.mxu0 0.0
    %305 = vmatprep.subr.mxu0 0.0
    %306 = vmatpush1.msra.mxu0 0.0
    %307 = vmatprep.subr.mxu0 0.0
    %308 = vmatpush1.msra.mxu0 0.0
    %309 = vmatprep.subr.mxu0 0.0
    %310 = vmatpush1.msra.mxu0 0.0
    %311 = vmatprep.subr.mxu0 0.0
    %312 = vmatpush1.msra.mxu0 0.0
    %313 = vmatprep.subr.mxu0 0.0
    %314 = vmatpush1.msra.mxu0 0.0
    %315 = vmatprep.subr.mxu0 0.0
    %316 = vmatpush1.msra.mxu0 0.0
    %317 = vmatprep.subr.mxu0 0.0
    %318 = vmatpush1.msra.mxu0 0.0
    %319 = vmatprep.subr.mxu0 0.0
    %320 = vmatpush1.msra.mxu0 0.0
    %321 = vmatprep.subr.mxu0 0.0
    %322 = vmatpush1.msra.mxu0 0.0
    %323 = vmatprep.subr.mxu0 0.0
    %324 = vmatpush1.msra.mxu0 0.0
    %325 = vmatprep.subr.mxu0 0.0
    %326 = vmatpush1.msra.mxu0 0.0
    %327 = vmatprep.subr.mxu0 0.0
    %328 = vmatpush1.msra.mxu0 0.0
    %329 = vmatprep.subr.mxu0 0.0
    %330 = vmatpush1.msra.mxu0 0.0
    %331 = vmatprep.subr.mxu0 0.0
    %332 = vmatpush1.msra.mxu0 0.0
    %333 = vmatprep.subr.mxu0 0.0
    %334 = vmatpush1.msra.mxu0 0.0
    %335 = vmatprep.subr.mxu0 0.0
    %336 = vmatpush1.msra.mxu0 0.0
    %337 = vmatprep.subr.mxu0 0.0
    %338 = vmatpush1.msra.mxu0 0.0
    %339 = vmatprep.subr.mxu0 0.0
    %340 = vmatpush1.msra.mxu0 0.0
    %341 = vmatprep.subr.mxu0 0.0
    %342 = vmatpush1.msra.mxu0 0.0
    %343 = vmatprep.mubr.f32.mxu0 0.0
    %344 = vmatmul.mubr.f32.gmra.mrb[0].mxu0 %v277
    %v345 = vpop.f32.mrb[0].mxu0
    %v346 = vadd.f32 %v276, %v345
    %v347 = vpop.f32.mrb[0].mxu0
    %348 = vdwg.mxu0
    %v349 = vxor.u32 %v346, 2147483648
    %v350 = vmul.f32 %v349, 1.442695
    %v351 = vpow.pop %v350
    %v352 = vadd.f32 %v351, 1.0
    %v353 = vrcp.pop %v352
    %v354 = vmul.f32 1.0, %v353
    %v355 = vtanh.pop %v346
    %v356 = vmul.f32 %v354, %v165
    %358 = vrot.lane.b32.xlu0 %v355, 64
    %v359 = vpop.permute.xlu0 %358
    %v361 = vmul.f32 %v354, %v359
    %363 = vrot.lane.b32.xlu0 %v361, 32
    %v364 = vpop.permute.xlu0 %363
    %v366 = vadd.f32 %v356, %v364
    %v367 = vtanh.pop %v366
    %369 = vrot.lane.b32.xlu0 %v367, 64
    %v370 = vpop.permute.xlu0 %369
    %v372 = vmul.f32 %v354, %v370
    %374 = vrot.lane.b32.xlu0 %v372, 32
    %v375 = vpop.permute.xlu0 %374
    %378 = vrot.lane.b32.xlu0 %v274, 64
    %v379 = vpop.permute.xlu0 %378
    %v381 = vsel %vm74, %v375, %v379
    %v383 = vsel %vm177, %v381, 0
    %385 = vmatprep.subr.mxu0 0.0
    %386 = vmatpush1.msra.mxu0 %v64
    %387 = vmatprep.subr.mxu0 0.0
    %388 = vmatpush1.msra.mxu0 %v65
    %389 = vmatprep.subr.mxu0 0.0
    %390 = vmatpush1.msra.mxu0 %v66
    %391 = vmatprep.subr.mxu0 0.0
    %392 = vmatpush1.msra.mxu0 %v67
    %393 = vmatprep.subr.mxu0 0.0
    %394 = vmatpush1.msra.mxu0 %v68
    %395 = vmatprep.subr.mxu0 0.0
    %396 = vmatpush1.msra.mxu0 %v69
    %397 = vmatprep.subr.mxu0 0.0
    %398 = vmatpush1.msra.mxu0 %v70
    %399 = vmatprep.subr.mxu0 0.0
    %400 = vmatpush1.msra.mxu0 %v71
    %401 = vmatprep.subr.mxu0 0.0
    %402 = vmatpush1.msra.mxu0 0.0
    %403 = vmatprep.subr.mxu0 0.0
    %404 = vmatpush1.msra.mxu0 0.0
    %405 = vmatprep.subr.mxu0 0.0
    %406 = vmatpush1.msra.mxu0 0.0
    %407 = vmatprep.subr.mxu0 0.0
    %408 = vmatpush1.msra.mxu0 0.0
    %409 = vmatprep.subr.mxu0 0.0
    %410 = vmatpush1.msra.mxu0 0.0
    %411 = vmatprep.subr.mxu0 0.0
    %412 = vmatpush1.msra.mxu0 0.0
    %413 = vmatprep.subr.mxu0 0.0
    %414 = vmatpush1.msra.mxu0 0.0
    %415 = vmatprep.subr.mxu0 0.0
    %416 = vmatpush1.msra.mxu0 0.0
    %417 = vmatprep.subr.mxu0 0.0
    %418 = vmatpush1.msra.mxu0 0.0
    %419 = vmatprep.subr.mxu0 0.0
    %420 = vmatpush1.msra.mxu0 0.0
    %421 = vmatprep.subr.mxu0 0.0
    %422 = vmatpush1.msra.mxu0 0.0
    %423 = vmatprep.subr.mxu0 0.0
    %424 = vmatpush1.msra.mxu0 0.0
    %425 = vmatprep.subr.mxu0 0.0
    %426 = vmatpush1.msra.mxu0 0.0
    %427 = vmatprep.subr.mxu0 0.0
    %428 = vmatpush1.msra.mxu0 0.0
    %429 = vmatprep.subr.mxu0 0.0
    %430 = vmatpush1.msra.mxu0 0.0
    %431 = vmatprep.subr.mxu0 0.0
    %432 = vmatpush1.msra.mxu0 0.0
    %433 = vmatprep.subr.mxu0 0.0
    %434 = vmatpush1.msra.mxu0 0.0
    %435 = vmatprep.subr.mxu0 0.0
    %436 = vmatpush1.msra.mxu0 0.0
    %437 = vmatprep.subr.mxu0 0.0
    %438 = vmatpush1.msra.mxu0 0.0
    %439 = vmatprep.subr.mxu0 0.0
    %440 = vmatpush1.msra.mxu0 0.0
    %441 = vmatprep.subr.mxu0 0.0
    %442 = vmatpush1.msra.mxu0 0.0
    %443 = vmatprep.subr.mxu0 0.0
    %444 = vmatpush1.msra.mxu0 0.0
    %445 = vmatprep.subr.mxu0 0.0
    %446 = vmatpush1.msra.mxu0 0.0
    %447 = vmatprep.subr.mxu0 0.0
    %448 = vmatpush1.msra.mxu0 0.0
    %449 = vmatprep.mubr.f32.mxu0 0.0
    %450 = vmatmul.mubr.f32.gmra.mrb[0].mxu0 %v383
    %v451 = vpop.f32.mrb[0].mxu0
    %v452 = vadd.f32 %v72, %v451
    %v453 = vpop.f32.mrb[0].mxu0
    %454 = vdwg.mxu0
    %v455 = vxor.u32 %v452, 2147483648
    %v456 = vmul.f32 %v455, 1.442695
    %v457 = vpow.pop %v456
    %v458 = vadd.f32 %v457, 1.0
    %v459 = vrcp.pop %v458
    %v460 = vmul.f32 1.0, %v459
    %v461 = vtanh.pop %v452
    %v462 = vmul.f32 %v460, %v268
    %464 = vrot.lane.b32.xlu0 %v461, 64
    %v465 = vpop.permute.xlu0 %464
    %v467 = vmul.f32 %v460, %v465
    %469 = vrot.lane.b32.xlu0 %v467, 32
    %v470 = vpop.permute.xlu0 %469
    %v472 = vadd.f32 %v462, %v470
    %v473 = vtanh.pop %v472
    %475 = vrot.lane.b32.xlu0 %v473, 64
    %v476 = vpop.permute.xlu0 %475
    %v478 = vmul.f32 %v460, %v476
    %s479 = scalar_lea.vmem [#allocation2], 4
    %v480 = vld [vmem:[%s479] sm:$0x3]
    %v481 = vsel %vm74, %v375, 0
    %483 = vmatprep.subr.mxu0 0.0
    %484 = vmatpush1.msra.mxu0 %v60
    %485 = vmatprep.subr.mxu0 0.0
    %486 = vmatpush1.msra.mxu0 %v61
    %487 = vmatprep.subr.mxu0 0.0
    %488 = vmatpush1.msra.mxu0 %v62
    %489 = vmatprep.subr.mxu0 0.0
    %490 = vmatpush1.msra.mxu0 %v63
    %491 = vmatprep.subr.mxu0 0.0
    %492 = vmatpush1.msra.mxu0 0.0
    %493 = vmatprep.subr.mxu0 0.0
    %494 = vmatpush1.msra.mxu0 0.0
    %495 = vmatprep.subr.mxu0 0.0
    %496 = vmatpush1.msra.mxu0 0.0
    %497 = vmatprep.subr.mxu0 0.0
    %498 = vmatpush1.msra.mxu0 0.0
    %499 = vmatprep.subr.mxu0 0.0
    %500 = vmatpush1.msra.mxu0 0.0
    %501 = vmatprep.subr.mxu0 0.0
    %502 = vmatpush1.msra.mxu0 0.0
    %503 = vmatprep.subr.mxu0 0.0
    %504 = vmatpush1.msra.mxu0 0.0
    %505 = vmatprep.subr.mxu0 0.0
    %506 = vmatpush1.msra.mxu0 0.0
    %507 = vmatprep.subr.mxu0 0.0
    %508 = vmatpush1.msra.mxu0 0.0
    %509 = vmatprep.subr.mxu0 0.0
    %510 = vmatpush1.msra.mxu0 0.0
    %511 = vmatprep.subr.mxu0 0.0
    %512 = vmatpush1.msra.mxu0 0.0
    %513 = vmatprep.subr.mxu0 0.0
    %514 = vmatpush1.msra.mxu0 0.0
    %515 = vmatprep.subr.mxu0 0.0
    %516 = vmatpush1.msra.mxu0 0.0
    %517 = vmatprep.subr.mxu0 0.0
    %518 = vmatpush1.msra.mxu0 0.0
    %519 = vmatprep.subr.mxu0 0.0
    %520 = vmatpush1.msra.mxu0 0.0
    %521 = vmatprep.subr.mxu0 0.0
    %522 = vmatpush1.msra.mxu0 0.0
    %523 = vmatprep.subr.mxu0 0.0
    %524 = vmatpush1.msra.mxu0 0.0
    %525 = vmatprep.subr.mxu0 0.0
    %526 = vmatpush1.msra.mxu0 0.0
    %527 = vmatprep.subr.mxu0 0.0
    %528 = vmatpush1.msra.mxu0 0.0
    %529 = vmatprep.subr.mxu0 0.0
    %530 = vmatpush1.msra.mxu0 0.0
    %531 = vmatprep.subr.mxu0 0.0
    %532 = vmatpush1.msra.mxu0 0.0
    %533 = vmatprep.subr.mxu0 0.0
    %534 = vmatpush1.msra.mxu0 0.0
    %535 = vmatprep.subr.mxu0 0.0
    %536 = vmatpush1.msra.mxu0 0.0
    %537 = vmatprep.subr.mxu0 0.0
    %538 = vmatpush1.msra.mxu0 0.0
    %539 = vmatprep.subr.mxu0 0.0
    %540 = vmatpush1.msra.mxu0 0.0
    %541 = vmatprep.subr.mxu0 0.0
    %542 = vmatpush1.msra.mxu0 0.0
    %543 = vmatprep.subr.mxu0 0.0
    %544 = vmatpush1.msra.mxu0 0.0
    %545 = vmatprep.subr.mxu0 0.0
    %546 = vmatpush1.msra.mxu0 0.0
    %547 = vmatprep.mubr.f32.mxu0 0.0
    %548 = vmatmul.mubr.f32.gmra.mrb[0].mxu0 %v481
    %v549 = vpop.f32.mrb[0].mxu0
    %v550 = vadd.f32 %v480, %v549
    %v551 = vpop.f32.mrb[0].mxu0
    %552 = vdwg.mxu0
    %v553 = vxor.u32 %v550, 2147483648
    %v554 = vmul.f32 %v553, 1.442695
    %v555 = vpow.pop %v554
    %v556 = vadd.f32 %v555, 1.0
    %v557 = vrcp.pop %v556
    %v558 = vmul.f32 1.0, %v557
    %v559 = vtanh.pop %v550
    %v560 = vmul.f32 %v558, %v366
    %562 = vrot.lane.b32.xlu0 %v559, 64
    %v563 = vpop.permute.xlu0 %562
    %v565 = vmul.f32 %v558, %v563
    %567 = vrot.lane.b32.xlu0 %v565, 32
    %v568 = vpop.permute.xlu0 %567
    %v570 = vadd.f32 %v560, %v568
    %v571 = vtanh.pop %v570
    %573 = vrot.lane.b32.xlu0 %v571, 64
    %v574 = vpop.permute.xlu0 %573
    %v576 = vmul.f32 %v558, %v574
    %578 = vrot.lane.b32.xlu0 %v576, 32
    %v579 = vpop.permute.xlu0 %578
    %582 = vrot.lane.b32.xlu0 %v478, 64
    %v583 = vpop.permute.xlu0 %582
    %v585 = vsel %vm74, %v579, %v583
    %v587 = vsel %vm177, %v585, 0
    %589 = vmatprep.subr.mxu0 0.0
    %590 = vmatpush1.msra.mxu0 %v64
    %591 = vmatprep.subr.mxu0 0.0
    %592 = vmatpush1.msra.mxu0 %v65
    %593 = vmatprep.subr.mxu0 0.0
    %594 = vmatpush1.msra.mxu0 %v66
    %595 = vmatprep.subr.mxu0 0.0
    %596 = vmatpush1.msra.mxu0 %v67
    %597 = vmatprep.subr.mxu0 0.0
    %598 = vmatpush1.msra.mxu0 %v68
    %599 = vmatprep.subr.mxu0 0.0
    %600 = vmatpush1.msra.mxu0 %v69
    %601 = vmatprep.subr.mxu0 0.0
    %602 = vmatpush1.msra.mxu0 %v70
    %603 = vmatprep.subr.mxu0 0.0
    %604 = vmatpush1.msra.mxu0 %v71
    %605 = vmatprep.subr.mxu0 0.0
    %606 = vmatpush1.msra.mxu0 0.0
    %607 = vmatprep.subr.mxu0 0.0
    %608 = vmatpush1.msra.mxu0 0.0
    %609 = vmatprep.subr.mxu0 0.0
    %610 = vmatpush1.msra.mxu0 0.0
    %611 = vmatprep.subr.mxu0 0.0
    %612 = vmatpush1.msra.mxu0 0.0
    %613 = vmatprep.subr.mxu0 0.0
    %614 = vmatpush1.msra.mxu0 0.0
    %615 = vmatprep.subr.mxu0 0.0
    %616 = vmatpush1.msra.mxu0 0.0
    %617 = vmatprep.subr.mxu0 0.0
    %618 = vmatpush1.msra.mxu0 0.0
    %619 = vmatprep.subr.mxu0 0.0
    %620 = vmatpush1.msra.mxu0 0.0
    %621 = vmatprep.subr.mxu0 0.0
    %622 = vmatpush1.msra.mxu0 0.0
    %623 = vmatprep.subr.mxu0 0.0
    %624 = vmatpush1.msra.mxu0 0.0
    %625 = vmatprep.subr.mxu0 0.0
    %626 = vmatpush1.msra.mxu0 0.0
    %627 = vmatprep.subr.mxu0 0.0
    %628 = vmatpush1.msra.mxu0 0.0
    %629 = vmatprep.subr.mxu0 0.0
    %630 = vmatpush1.msra.mxu0 0.0
    %631 = vmatprep.subr.mxu0 0.0
    %632 = vmatpush1.msra.mxu0 0.0
    %633 = vmatprep.subr.mxu0 0.0
    %634 = vmatpush1.msra.mxu0 0.0
    %635 = vmatprep.subr.mxu0 0.0
    %636 = vmatpush1.msra.mxu0 0.0
    %637 = vmatprep.subr.mxu0 0.0
    %638 = vmatpush1.msra.mxu0 0.0
    %639 = vmatprep.subr.mxu0 0.0
    %640 = vmatpush1.msra.mxu0 0.0
    %641 = vmatprep.subr.mxu0 0.0
    %642 = vmatpush1.msra.mxu0 0.0
    %643 = vmatprep.subr.mxu0 0.0
    %644 = vmatpush1.msra.mxu0 0.0
    %645 = vmatprep.subr.mxu0 0.0
    %646 = vmatpush1.msra.mxu0 0.0
    %647 = vmatprep.subr.mxu0 0.0
    %648 = vmatpush1.msra.mxu0 0.0
    %649 = vmatprep.subr.mxu0 0.0
    %650 = vmatpush1.msra.mxu0 0.0
    %651 = vmatprep.subr.mxu0 0.0
    %652 = vmatpush1.msra.mxu0 0.0
    %653 = vmatprep.mubr.f32.mxu0 0.0
    %654 = vmatmul.mubr.f32.gmra.mrb[0].mxu0 %v587
    %v655 = vpop.f32.mrb[0].mxu0
    %v656 = vadd.f32 %v72, %v655
    %v657 = vpop.f32.mrb[0].mxu0
    %658 = vdwg.mxu0
    %v659 = vxor.u32 %v656, 2147483648
    %v660 = vmul.f32 %v659, 1.442695
    %v661 = vpow.pop %v660
    %v662 = vadd.f32 %v661, 1.0
    %v663 = vrcp.pop %v662
    %v664 = vmul.f32 1.0, %v663
    %v665 = vtanh.pop %v656
    %v666 = vmul.f32 %v664, %v472
    %668 = vrot.lane.b32.xlu0 %v665, 64
    %v669 = vpop.permute.xlu0 %668
    %v671 = vmul.f32 %v664, %v669
    %673 = vrot.lane.b32.xlu0 %v671, 32
    %v674 = vpop.permute.xlu0 %673
    %v676 = vadd.f32 %v666, %v674
    %v677 = vtanh.pop %v676
    %679 = vrot.lane.b32.xlu0 %v677, 64
    %v680 = vpop.permute.xlu0 %679
    %v682 = vmul.f32 %v664, %v680
    %s683 = scalar_lea.vmem [#allocation2], 6
    %v684 = vld [vmem:[%s683] sm:$0x3]
    %v685 = vsel %vm74, %v579, 0
    %687 = vmatprep.subr.mxu0 0.0
    %688 = vmatpush1.msra.mxu0 %v60
    %689 = vmatprep.subr.mxu0 0.0
    %690 = vmatpush1.msra.mxu0 %v61
    %691 = vmatprep.subr.mxu0 0.0
    %692 = vmatpush1.msra.mxu0 %v62
    %693 = vmatprep.subr.mxu0 0.0
    %694 = vmatpush1.msra.mxu0 %v63
    %695 = vmatprep.subr.mxu0 0.0
    %696 = vmatpush1.msra.mxu0 0.0
    %697 = vmatprep.subr.mxu0 0.0
    %698 = vmatpush1.msra.mxu0 0.0
    %699 = vmatprep.subr.mxu0 0.0
    %700 = vmatpush1.msra.mxu0 0.0
    %701 = vmatprep.subr.mxu0 0.0
    %702 = vmatpush1.msra.mxu0 0.0
    %703 = vmatprep.subr.mxu0 0.0
    %704 = vmatpush1.msra.mxu0 0.0
    %705 = vmatprep.subr.mxu0 0.0
    %706 = vmatpush1.msra.mxu0 0.0
    %707 = vmatprep.subr.mxu0 0.0
    %708 = vmatpush1.msra.mxu0 0.0
    %709 = vmatprep.subr.mxu0 0.0
    %710 = vmatpush1.msra.mxu0 0.0
    %711 = vmatprep.subr.mxu0 0.0
    %712 = vmatpush1.msra.mxu0 0.0
    %713 = vmatprep.subr.mxu0 0.0
    %714 = vmatpush1.msra.mxu0 0.0
    %715 = vmatprep.subr.mxu0 0.0
    %716 = vmatpush1.msra.mxu0 0.0
    %717 = vmatprep.subr.mxu0 0.0
    %718 = vmatpush1.msra.mxu0 0.0
    %719 = vmatprep.subr.mxu0 0.0
    %720 = vmatpush1.msra.mxu0 0.0
    %721 = vmatprep.subr.mxu0 0.0
    %722 = vmatpush1.msra.mxu0 0.0
    %723 = vmatprep.subr.mxu0 0.0
    %724 = vmatpush1.msra.mxu0 0.0
    %725 = vmatprep.subr.mxu0 0.0
    %726 = vmatpush1.msra.mxu0 0.0
    %727 = vmatprep.subr.mxu0 0.0
    %728 = vmatpush1.msra.mxu0 0.0
    %729 = vmatprep.subr.mxu0 0.0
    %730 = vmatpush1.msra.mxu0 0.0
    %731 = vmatprep.subr.mxu0 0.0
    %732 = vmatpush1.msra.mxu0 0.0
    %733 = vmatprep.subr.mxu0 0.0
    %734 = vmatpush1.msra.mxu0 0.0
    %735 = vmatprep.subr.mxu0 0.0
    %736 = vmatpush1.msra.mxu0 0.0
    %737 = vmatprep.subr.mxu0 0.0
    %738 = vmatpush1.msra.mxu0 0.0
    %739 = vmatprep.subr.mxu0 0.0
    %740 = vmatpush1.msra.mxu0 0.0
    %741 = vmatprep.subr.mxu0 0.0
    %742 = vmatpush1.msra.mxu0 0.0
    %743 = vmatprep.subr.mxu0 0.0
    %744 = vmatpush1.msra.mxu0 0.0
    %745 = vmatprep.subr.mxu0 0.0
    %746 = vmatpush1.msra.mxu0 0.0
    %747 = vmatprep.subr.mxu0 0.0
    %748 = vmatpush1.msra.mxu0 0.0
    %749 = vmatprep.subr.mxu0 0.0
    %750 = vmatpush1.msra.mxu0 0.0
    %751 = vmatprep.mubr.f32.mxu0 0.0
    %752 = vmatmul.mubr.f32.gmra.mrb[0].mxu0 %v685
    %v753 = vpop.f32.mrb[0].mxu0
    %v754 = vadd.f32 %v684, %v753
    %v755 = vpop.f32.mrb[0].mxu0
    %756 = vdwg.mxu0
    %v757 = vxor.u32 %v754, 2147483648
    %v758 = vmul.f32 %v757, 1.442695
    %v759 = vpow.pop %v758
    %v760 = vadd.f32 %v759, 1.0
    %v761 = vrcp.pop %v760
    %v762 = vmul.f32 1.0, %v761
    %v763 = vtanh.pop %v754
    %v764 = vmul.f32 %v762, %v570
    %766 = vrot.lane.b32.xlu0 %v763, 64
    %v767 = vpop.permute.xlu0 %766
    %v769 = vmul.f32 %v762, %v767
    %771 = vrot.lane.b32.xlu0 %v769, 32
    %v772 = vpop.permute.xlu0 %771
    %v774 = vadd.f32 %v764, %v772
    %v775 = vtanh.pop %v774
    %777 = vrot.lane.b32.xlu0 %v775, 64
    %v778 = vpop.permute.xlu0 %777
    %v780 = vmul.f32 %v762, %v778
    %782 = vrot.lane.b32.xlu0 %v780, 32
    %v783 = vpop.permute.xlu0 %782
    %786 = vrot.lane.b32.xlu0 %v682, 64
    %v787 = vpop.permute.xlu0 %786
    %v789 = vsel %vm74, %v783, %v787
    %v791 = vsel %vm177, %v789, 0
    %793 = vmatprep.subr.mxu0 0.0
    %794 = vmatpush1.msra.mxu0 %v64
    %795 = vmatprep.subr.mxu0 0.0
    %796 = vmatpush1.msra.mxu0 %v65
    %797 = vmatprep.subr.mxu0 0.0
    %798 = vmatpush1.msra.mxu0 %v66
    %799 = vmatprep.subr.mxu0 0.0
    %800 = vmatpush1.msra.mxu0 %v67
    %801 = vmatprep.subr.mxu0 0.0
    %802 = vmatpush1.msra.mxu0 %v68
    %803 = vmatprep.subr.mxu0 0.0
    %804 = vmatpush1.msra.mxu0 %v69
    %805 = vmatprep.subr.mxu0 0.0
    %806 = vmatpush1.msra.mxu0 %v70
    %807 = vmatprep.subr.mxu0 0.0
    %808 = vmatpush1.msra.mxu0 %v71
    %809 = vmatprep.subr.mxu0 0.0
    %810 = vmatpush1.msra.mxu0 0.0
    %811 = vmatprep.subr.mxu0 0.0
    %812 = vmatpush1.msra.mxu0 0.0
    %813 = vmatprep.subr.mxu0 0.0
    %814 = vmatpush1.msra.mxu0 0.0
    %815 = vmatprep.subr.mxu0 0.0
    %816 = vmatpush1.msra.mxu0 0.0
    %817 = vmatprep.subr.mxu0 0.0
    %818 = vmatpush1.msra.mxu0 0.0
    %819 = vmatprep.subr.mxu0 0.0
    %820 = vmatpush1.msra.mxu0 0.0
    %821 = vmatprep.subr.mxu0 0.0
    %822 = vmatpush1.msra.mxu0 0.0
    %823 = vmatprep.subr.mxu0 0.0
    %824 = vmatpush1.msra.mxu0 0.0
    %825 = vmatprep.subr.mxu0 0.0
    %826 = vmatpush1.msra.mxu0 0.0
    %827 = vmatprep.subr.mxu0 0.0
    %828 = vmatpush1.msra.mxu0 0.0
    %829 = vmatprep.subr.mxu0 0.0
    %830 = vmatpush1.msra.mxu0 0.0
    %831 = vmatprep.subr.mxu0 0.0
    %832 = vmatpush1.msra.mxu0 0.0
    %833 = vmatprep.subr.mxu0 0.0
    %834 = vmatpush1.msra.mxu0 0.0
    %835 = vmatprep.subr.mxu0 0.0
    %836 = vmatpush1.msra.mxu0 0.0
    %837 = vmatprep.subr.mxu0 0.0
    %838 = vmatpush1.msra.mxu0 0.0
    %839 = vmatprep.subr.mxu0 0.0
    %840 = vmatpush1.msra.mxu0 0.0
    %841 = vmatprep.subr.mxu0 0.0
    %842 = vmatpush1.msra.mxu0 0.0
    %843 = vmatprep.subr.mxu0 0.0
    %844 = vmatpush1.msra.mxu0 0.0
    %845 = vmatprep.subr.mxu0 0.0
    %846 = vmatpush1.msra.mxu0 0.0
    %847 = vmatprep.subr.mxu0 0.0
    %848 = vmatpush1.msra.mxu0 0.0
    %849 = vmatprep.subr.mxu0 0.0
    %850 = vmatpush1.msra.mxu0 0.0
    %851 = vmatprep.subr.mxu0 0.0
    %852 = vmatpush1.msra.mxu0 0.0
    %853 = vmatprep.subr.mxu0 0.0
    %854 = vmatpush1.msra.mxu0 0.0
    %855 = vmatprep.subr.mxu0 0.0
    %856 = vmatpush1.msra.mxu0 0.0
    %857 = vmatprep.mubr.f32.mxu0 0.0
    %858 = vmatmul.mubr.f32.gmra.mrb[0].mxu0 %v791
    %v859 = vpop.f32.mrb[0].mxu0
    %v860 = vadd.f32 %v72, %v859
    %v861 = vpop.f32.mrb[0].mxu0
    %862 = vdwg.mxu0
    %v863 = vxor.u32 %v860, 2147483648
    %v864 = vmul.f32 %v863, 1.442695
    %v865 = vpow.pop %v864
    %v866 = vadd.f32 %v865, 1.0
    %v867 = vrcp.pop %v866
    %v868 = vmul.f32 1.0, %v867
    %v869 = vtanh.pop %v860
    %v870 = vmul.f32 %v868, %v676
    %872 = vrot.lane.b32.xlu0 %v869, 64
    %v873 = vpop.permute.xlu0 %872
    %v875 = vmul.f32 %v868, %v873
    %877 = vrot.lane.b32.xlu0 %v875, 32
    %v878 = vpop.permute.xlu0 %877
    %v880 = vadd.f32 %v870, %v878
    %v881 = vtanh.pop %v880
    %883 = vrot.lane.b32.xlu0 %v881, 64
    %v884 = vpop.permute.xlu0 %883
    %v886 = vmul.f32 %v868, %v884
    %s887 = scalar_lea.vmem [#allocation2], 8
    %v888 = vld [vmem:[%s887] sm:$0x3]
    %v889 = vsel %vm74, %v783, 0
    %891 = vmatprep.subr.mxu0 0.0
    %892 = vmatpush1.msra.mxu0 %v60
    %893 = vmatprep.subr.mxu0 0.0
    %894 = vmatpush1.msra.mxu0 %v61
    %895 = vmatprep.subr.mxu0 0.0
    %896 = vmatpush1.msra.mxu0 %v62
    %897 = vmatprep.subr.mxu0 0.0
    %898 = vmatpush1.msra.mxu0 %v63
    %899 = vmatprep.subr.mxu0 0.0
    %900 = vmatpush1.msra.mxu0 0.0
    %901 = vmatprep.subr.mxu0 0.0
    %902 = vmatpush1.msra.mxu0 0.0
    %903 = vmatprep.subr.mxu0 0.0
    %904 = vmatpush1.msra.mxu0 0.0
    %905 = vmatprep.subr.mxu0 0.0
    %906 = vmatpush1.msra.mxu0 0.0
    %907 = vmatprep.subr.mxu0 0.0
    %908 = vmatpush1.msra.mxu0 0.0
    %909 = vmatprep.subr.mxu0 0.0
    %910 = vmatpush1.msra.mxu0 0.0
    %911 = vmatprep.subr.mxu0 0.0
    %912 = vmatpush1.msra.mxu0 0.0
    %913 = vmatprep.subr.mxu0 0.0
    %914 = vmatpush1.msra.mxu0 0.0
    %915 = vmatprep.subr.mxu0 0.0
    %916 = vmatpush1.msra.mxu0 0.0
    %917 = vmatprep.subr.mxu0 0.0
    %918 = vmatpush1.msra.mxu0 0.0
    %919 = vmatprep.subr.mxu0 0.0
    %920 = vmatpush1.msra.mxu0 0.0
    %921 = vmatprep.subr.mxu0 0.0
    %922 = vmatpush1.msra.mxu0 0.0
    %923 = vmatprep.subr.mxu0 0.0
    %924 = vmatpush1.msra.mxu0 0.0
    %925 = vmatprep.subr.mxu0 0.0
    %926 = vmatpush1.msra.mxu0 0.0
    %927 = vmatprep.subr.mxu0 0.0
    %928 = vmatpush1.msra.mxu0 0.0
    %929 = vmatprep.subr.mxu0 0.0
    %930 = vmatpush1.msra.mxu0 0.0
    %931 = vmatprep.subr.mxu0 0.0
    %932 = vmatpush1.msra.mxu0 0.0
    %933 = vmatprep.subr.mxu0 0.0
    %934 = vmatpush1.msra.mxu0 0.0
    %935 = vmatprep.subr.mxu0 0.0
    %936 = vmatpush1.msra.mxu0 0.0
    %937 = vmatprep.subr.mxu0 0.0
    %938 = vmatpush1.msra.mxu0 0.0
    %939 = vmatprep.subr.mxu0 0.0
    %940 = vmatpush1.msra.mxu0 0.0
    %941 = vmatprep.subr.mxu0 0.0
    %942 = vmatpush1.msra.mxu0 0.0
    %943 = vmatprep.subr.mxu0 0.0
    %944 = vmatpush1.msra.mxu0 0.0
    %945 = vmatprep.subr.mxu0 0.0
    %946 = vmatpush1.msra.mxu0 0.0
    %947 = vmatprep.subr.mxu0 0.0
    %948 = vmatpush1.msra.mxu0 0.0
    %949 = vmatprep.subr.mxu0 0.0
    %950 = vmatpush1.msra.mxu0 0.0
    %951 = vmatprep.subr.mxu0 0.0
    %952 = vmatpush1.msra.mxu0 0.0
    %953 = vmatprep.subr.mxu0 0.0
    %954 = vmatpush1.msra.mxu0 0.0
    %955 = vmatprep.mubr.f32.mxu0 0.0
    %956 = vmatmul.mubr.f32.gmra.mrb[0].mxu0 %v889
    %v957 = vpop.f32.mrb[0].mxu0
    %v958 = vadd.f32 %v888, %v957
    %v959 = vpop.f32.mrb[0].mxu0
    %960 = vdwg.mxu0
    %v961 = vxor.u32 %v958, 2147483648
    %v962 = vmul.f32 %v961, 1.442695
    %v963 = vpow.pop %v962
    %v964 = vadd.f32 %v963, 1.0
    %v965 = vrcp.pop %v964
    %v966 = vmul.f32 1.0, %v965
    %v967 = vtanh.pop %v958
    %v968 = vmul.f32 %v966, %v774
    %970 = vrot.lane.b32.xlu0 %v967, 64
    %v971 = vpop.permute.xlu0 %970
    %v973 = vmul.f32 %v966, %v971
    %975 = vrot.lane.b32.xlu0 %v973, 32
    %v976 = vpop.permute.xlu0 %975
    %v978 = vadd.f32 %v968, %v976
    %v979 = vtanh.pop %v978
    %981 = vrot.lane.b32.xlu0 %v979, 64
    %v982 = vpop.permute.xlu0 %981
    %v984 = vmul.f32 %v966, %v982
    %986 = vrot.lane.b32.xlu0 %v984, 32
    %v987 = vpop.permute.xlu0 %986
    %990 = vrot.lane.b32.xlu0 %v886, 64
    %v991 = vpop.permute.xlu0 %990
    %v993 = vsel %vm74, %v987, %v991
    %v995 = vsel %vm177, %v993, 0
    %997 = vmatprep.subr.mxu0 0.0
    %998 = vmatpush1.msra.mxu0 %v64
    %999 = vmatprep.subr.mxu0 0.0
    %1000 = vmatpush1.msra.mxu0 %v65
    %1001 = vmatprep.subr.mxu0 0.0
    %1002 = vmatpush1.msra.mxu0 %v66
    %1003 = vmatprep.subr.mxu0 0.0
    %1004 = vmatpush1.msra.mxu0 %v67
    %1005 = vmatprep.subr.mxu0 0.0
    %1006 = vmatpush1.msra.mxu0 %v68
    %1007 = vmatprep.subr.mxu0 0.0
    %1008 = vmatpush1.msra.mxu0 %v69
    %1009 = vmatprep.subr.mxu0 0.0
    %1010 = vmatpush1.msra.mxu0 %v70
    %1011 = vmatprep.subr.mxu0 0.0
    %1012 = vmatpush1.msra.mxu0 %v71
    %1013 = vmatprep.subr.mxu0 0.0
    %1014 = vmatpush1.msra.mxu0 0.0
    %1015 = vmatprep.subr.mxu0 0.0
    %1016 = vmatpush1.msra.mxu0 0.0
    %1017 = vmatprep.subr.mxu0 0.0
    %1018 = vmatpush1.msra.mxu0 0.0
    %1019 = vmatprep.subr.mxu0 0.0
    %1020 = vmatpush1.msra.mxu0 0.0
    %1021 = vmatprep.subr.mxu0 0.0
    %1022 = vmatpush1.msra.mxu0 0.0
    %1023 = vmatprep.subr.mxu0 0.0
    %1024 = vmatpush1.msra.mxu0 0.0
    %1025 = vmatprep.subr.mxu0 0.0
    %1026 = vmatpush1.msra.mxu0 0.0
    %1027 = vmatprep.subr.mxu0 0.0
    %1028 = vmatpush1.msra.mxu0 0.0
    %1029 = vmatprep.subr.mxu0 0.0
    %1030 = vmatpush1.msra.mxu0 0.0
    %1031 = vmatprep.subr.mxu0 0.0
    %1032 = vmatpush1.msra.mxu0 0.0
    %1033 = vmatprep.subr.mxu0 0.0
    %1034 = vmatpush1.msra.mxu0 0.0
    %1035 = vmatprep.subr.mxu0 0.0
    %1036 = vmatpush1.msra.mxu0 0.0
    %1037 = vmatprep.subr.mxu0 0.0
    %1038 = vmatpush1.msra.mxu0 0.0
    %1039 = vmatprep.subr.mxu0 0.0
    %1040 = vmatpush1.msra.mxu0 0.0
    %1041 = vmatprep.subr.mxu0 0.0
    %1042 = vmatpush1.msra.mxu0 0.0
    %1043 = vmatprep.subr.mxu0 0.0
    %1044 = vmatpush1.msra.mxu0 0.0
    %1045 = vmatprep.subr.mxu0 0.0
    %1046 = vmatpush1.msra.mxu0 0.0
    %1047 = vmatprep.subr.mxu0 0.0
    %1048 = vmatpush1.msra.mxu0 0.0
    %1049 = vmatprep.subr.mxu0 0.0
    %1050 = vmatpush1.msra.mxu0 0.0
    %1051 = vmatprep.subr.mxu0 0.0
    %1052 = vmatpush1.msra.mxu0 0.0
    %1053 = vmatprep.subr.mxu0 0.0
    %1054 = vmatpush1.msra.mxu0 0.0
    %1055 = vmatprep.subr.mxu0 0.0
    %1056 = vmatpush1.msra.mxu0 0.0
    %1057 = vmatprep.subr.mxu0 0.0
    %1058 = vmatpush1.msra.mxu0 0.0
    %1059 = vmatprep.subr.mxu0 0.0
    %1060 = vmatpush1.msra.mxu0 0.0
    %1061 = vmatprep.mubr.f32.mxu0 0.0
    %1062 = vmatmul.mubr.f32.gmra.mrb[0].mxu0 %v995
    %v1063 = vpop.f32.mrb[0].mxu0
    %v1064 = vadd.f32 %v72, %v1063
    %v1065 = vpop.f32.mrb[0].mxu0
    %1066 = vdwg.mxu0
    %v1067 = vxor.u32 %v1064, 2147483648
    %v1068 = vmul.f32 %v1067, 1.442695
    %v1069 = vpow.pop %v1068
    %v1070 = vadd.f32 %v1069, 1.0
    %v1071 = vrcp.pop %v1070
    %v1072 = vmul.f32 1.0, %v1071
    %v1073 = vtanh.pop %v1064
    %v1074 = vmul.f32 %v1072, %v880
    %1076 = vrot.lane.b32.xlu0 %v1073, 64
    %v1077 = vpop.permute.xlu0 %1076
    %v1079 = vmul.f32 %v1072, %v1077
    %1081 = vrot.lane.b32.xlu0 %v1079, 32
    %v1082 = vpop.permute.xlu0 %1081
    %v1084 = vadd.f32 %v1074, %v1082
    %v1085 = vtanh.pop %v1084
    %1087 = vrot.lane.b32.xlu0 %v1085, 64
    %v1088 = vpop.permute.xlu0 %1087
    %v1090 = vmul.f32 %v1072, %v1088
    %s1091 = scalar_lea.vmem [#allocation2], 10
    %v1092 = vld [vmem:[%s1091] sm:$0x3]
    %v1093 = vsel %vm74, %v987, 0
    %1095 = vmatprep.subr.mxu0 0.0
    %1096 = vmatpush1.msra.mxu0 %v60
    %1097 = vmatprep.subr.mxu0 0.0
    %1098 = vmatpush1.msra.mxu0 %v61
    %1099 = vmatprep.subr.mxu0 0.0
    %1100 = vmatpush1.msra.mxu0 %v62
    %1101 = vmatprep.subr.mxu0 0.0
    %1102 = vmatpush1.msra.mxu0 %v63
    %1103 = vmatprep.subr.mxu0 0.0
    %1104 = vmatpush1.msra.mxu0 0.0
    %1105 = vmatprep.subr.mxu0 0.0
    %1106 = vmatpush1.msra.mxu0 0.0
    %1107 = vmatprep.subr.mxu0 0.0
    %1108 = vmatpush1.msra.mxu0 0.0
    %1109 = vmatprep.subr.mxu0 0.0
    %1110 = vmatpush1.msra.mxu0 0.0
    %1111 = vmatprep.subr.mxu0 0.0
    %1112 = vmatpush1.msra.mxu0 0.0
    %1113 = vmatprep.subr.mxu0 0.0
    %1114 = vmatpush1.msra.mxu0 0.0
    %1115 = vmatprep.subr.mxu0 0.0
    %1116 = vmatpush1.msra.mxu0 0.0
    %1117 = vmatprep.subr.mxu0 0.0
    %1118 = vmatpush1.msra.mxu0 0.0
    %1119 = vmatprep.subr.mxu0 0.0
    %1120 = vmatpush1.msra.mxu0 0.0
    %1121 = vmatprep.subr.mxu0 0.0
    %1122 = vmatpush1.msra.mxu0 0.0
    %1123 = vmatprep.subr.mxu0 0.0
    %1124 = vmatpush1.msra.mxu0 0.0
    %1125 = vmatprep.subr.mxu0 0.0
    %1126 = vmatpush1.msra.mxu0 0.0
    %1127 = vmatprep.subr.mxu0 0.0
    %1128 = vmatpush1.msra.mxu0 0.0
    %1129 = vmatprep.subr.mxu0 0.0
    %1130 = vmatpush1.msra.mxu0 0.0
    %1131 = vmatprep.subr.mxu0 0.0
    %1132 = vmatpush1.msra.mxu0 0.0
    %1133 = vmatprep.subr.mxu0 0.0
    %1134 = vmatpush1.msra.mxu0 0.0
    %1135 = vmatprep.subr.mxu0 0.0
    %1136 = vmatpush1.msra.mxu0 0.0
    %1137 = vmatprep.subr.mxu0 0.0
    %1138 = vmatpush1.msra.mxu0 0.0
    %1139 = vmatprep.subr.mxu0 0.0
    %1140 = vmatpush1.msra.mxu0 0.0
    %1141 = vmatprep.subr.mxu0 0.0
    %1142 = vmatpush1.msra.mxu0 0.0
    %1143 = vmatprep.subr.mxu0 0.0
    %1144 = vmatpush1.msra.mxu0 0.0
    %1145 = vmatprep.subr.mxu0 0.0
    %1146 = vmatpush1.msra.mxu0 0.0
    %1147 = vmatprep.subr.mxu0 0.0
    %1148 = vmatpush1.msra.mxu0 0.0
    %1149 = vmatprep.subr.mxu0 0.0
    %1150 = vmatpush1.msra.mxu0 0.0
    %1151 = vmatprep.subr.mxu0 0.0
    %1152 = vmatpush1.msra.mxu0 0.0
    %1153 = vmatprep.subr.mxu0 0.0
    %1154 = vmatpush1.msra.mxu0 0.0
    %1155 = vmatprep.subr.mxu0 0.0
    %1156 = vmatpush1.msra.mxu0 0.0
    %1157 = vmatprep.subr.mxu0 0.0
    %1158 = vmatpush1.msra.mxu0 0.0
    %1159 = vmatprep.mubr.f32.mxu0 0.0
    %1160 = vmatmul.mubr.f32.gmra.mrb[0].mxu0 %v1093
    %v1161 = vpop.f32.mrb[0].mxu0
    %v1162 = vadd.f32 %v1092, %v1161
    %v1163 = vpop.f32.mrb[0].mxu0
    %1164 = vdwg.mxu0
    %v1165 = vxor.u32 %v1162, 2147483648
    %v1166 = vmul.f32 %v1165, 1.442695
    %v1167 = vpow.pop %v1166
    %v1168 = vadd.f32 %v1167, 1.0
    %v1169 = vrcp.pop %v1168
    %v1170 = vmul.f32 1.0, %v1169
    %v1171 = vtanh.pop %v1162
    %v1172 = vmul.f32 %v1170, %v978
    %1174 = vrot.lane.b32.xlu0 %v1171, 64
    %v1175 = vpop.permute.xlu0 %1174
    %v1177 = vmul.f32 %v1170, %v1175
    %1179 = vrot.lane.b32.xlu0 %v1177, 32
    %v1180 = vpop.permute.xlu0 %1179
    %v1182 = vadd.f32 %v1172, %v1180
    %v1183 = vtanh.pop %v1182
    %1185 = vrot.lane.b32.xlu0 %v1183, 64
    %v1186 = vpop.permute.xlu0 %1185
    %v1188 = vmul.f32 %v1170, %v1186
    %1190 = vrot.lane.b32.xlu0 %v1188, 32
    %v1191 = vpop.permute.xlu0 %1190
    %1194 = vrot.lane.b32.xlu0 %v1090, 64
    %v1195 = vpop.permute.xlu0 %1194
    %v1197 = vsel %vm74, %v1191, %v1195
    %v1199 = vsel %vm177, %v1197, 0
    %1201 = vmatprep.subr.mxu0 0.0
    %1202 = vmatpush1.msra.mxu0 %v64
    %1203 = vmatprep.subr.mxu0 0.0
    %1204 = vmatpush1.msra.mxu0 %v65
    %1205 = vmatprep.subr.mxu0 0.0
    %1206 = vmatpush1.msra.mxu0 %v66
    %1207 = vmatprep.subr.mxu0 0.0
    %1208 = vmatpush1.msra.mxu0 %v67
    %1209 = vmatprep.subr.mxu0 0.0
    %1210 = vmatpush1.msra.mxu0 %v68
    %1211 = vmatprep.subr.mxu0 0.0
    %1212 = vmatpush1.msra.mxu0 %v69
    %1213 = vmatprep.subr.mxu0 0.0
    %1214 = vmatpush1.msra.mxu0 %v70
    %1215 = vmatprep.subr.mxu0 0.0
    %1216 = vmatpush1.msra.mxu0 %v71
    %1217 = vmatprep.subr.mxu0 0.0
    %1218 = vmatpush1.msra.mxu0 0.0
    %1219 = vmatprep.subr.mxu0 0.0
    %1220 = vmatpush1.msra.mxu0 0.0
    %1221 = vmatprep.subr.mxu0 0.0
    %1222 = vmatpush1.msra.mxu0 0.0
    %1223 = vmatprep.subr.mxu0 0.0
    %1224 = vmatpush1.msra.mxu0 0.0
    %1225 = vmatprep.subr.mxu0 0.0
    %1226 = vmatpush1.msra.mxu0 0.0
    %1227 = vmatprep.subr.mxu0 0.0
    %1228 = vmatpush1.msra.mxu0 0.0
    %1229 = vmatprep.subr.mxu0 0.0
    %1230 = vmatpush1.msra.mxu0 0.0
    %1231 = vmatprep.subr.mxu0 0.0
    %1232 = vmatpush1.msra.mxu0 0.0
    %1233 = vmatprep.subr.mxu0 0.0
    %1234 = vmatpush1.msra.mxu0 0.0
    %1235 = vmatprep.subr.mxu0 0.0
    %1236 = vmatpush1.msra.mxu0 0.0
    %1237 = vmatprep.subr.mxu0 0.0
    %1238 = vmatpush1.msra.mxu0 0.0
    %1239 = vmatprep.subr.mxu0 0.0
    %1240 = vmatpush1.msra.mxu0 0.0
    %1241 = vmatprep.subr.mxu0 0.0
    %1242 = vmatpush1.msra.mxu0 0.0
    %1243 = vmatprep.subr.mxu0 0.0
    %1244 = vmatpush1.msra.mxu0 0.0
    %1245 = vmatprep.subr.mxu0 0.0
    %1246 = vmatpush1.msra.mxu0 0.0
    %1247 = vmatprep.subr.mxu0 0.0
    %1248 = vmatpush1.msra.mxu0 0.0
    %1249 = vmatprep.subr.mxu0 0.0
    %1250 = vmatpush1.msra.mxu0 0.0
    %1251 = vmatprep.subr.mxu0 0.0
    %1252 = vmatpush1.msra.mxu0 0.0
    %1253 = vmatprep.subr.mxu0 0.0
    %1254 = vmatpush1.msra.mxu0 0.0
    %1255 = vmatprep.subr.mxu0 0.0
    %1256 = vmatpush1.msra.mxu0 0.0
    %1257 = vmatprep.subr.mxu0 0.0
    %1258 = vmatpush1.msra.mxu0 0.0
    %1259 = vmatprep.subr.mxu0 0.0
    %1260 = vmatpush1.msra.mxu0 0.0
    %1261 = vmatprep.subr.mxu0 0.0
    %1262 = vmatpush1.msra.mxu0 0.0
    %1263 = vmatprep.subr.mxu0 0.0
    %1264 = vmatpush1.msra.mxu0 0.0
    %1265 = vmatprep.mubr.f32.mxu0 0.0
    %1266 = vmatmul.mubr.f32.gmra.mrb[0].mxu0 %v1199
    %v1267 = vpop.f32.mrb[0].mxu0
    %v1268 = vadd.f32 %v72, %v1267
    %v1269 = vpop.f32.mrb[0].mxu0
    %1270 = vdwg.mxu0
    %v1271 = vxor.u32 %v1268, 2147483648
    %v1272 = vmul.f32 %v1271, 1.442695
    %v1273 = vpow.pop %v1272
    %v1274 = vadd.f32 %v1273, 1.0
    %v1275 = vrcp.pop %v1274
    %v1276 = vmul.f32 1.0, %v1275
    %v1277 = vtanh.pop %v1268
    %v1278 = vmul.f32 %v1276, %v1084
    %1280 = vrot.lane.b32.xlu0 %v1277, 64
    %v1281 = vpop.permute.xlu0 %1280
    %v1283 = vmul.f32 %v1276, %v1281
    %1285 = vrot.lane.b32.xlu0 %v1283, 32
    %v1286 = vpop.permute.xlu0 %1285
    %v1288 = vadd.f32 %v1278, %v1286
    %v1289 = vtanh.pop %v1288
    %1291 = vrot.lane.b32.xlu0 %v1289, 64
    %v1292 = vpop.permute.xlu0 %1291
    %v1294 = vmul.f32 %v1276, %v1292
    %s1295 = scalar_lea.vmem [#allocation2], 12
    %v1296 = vld [vmem:[%s1295] sm:$0x3]
    %v1297 = vsel %vm74, %v1191, 0
    %1299 = vmatprep.subr.mxu0 0.0
    %1300 = vmatpush1.msra.mxu0 %v60
    %1301 = vmatprep.subr.mxu0 0.0
    %1302 = vmatpush1.msra.mxu0 %v61
    %1303 = vmatprep.subr.mxu0 0.0
    %1304 = vmatpush1.msra.mxu0 %v62
    %1305 = vmatprep.subr.mxu0 0.0
    %1306 = vmatpush1.msra.mxu0 %v63
    %1307 = vmatprep.subr.mxu0 0.0
    %1308 = vmatpush1.msra.mxu0 0.0
    %1309 = vmatprep.subr.mxu0 0.0
    %1310 = vmatpush1.msra.mxu0 0.0
    %1311 = vmatprep.subr.mxu0 0.0
    %1312 = vmatpush1.msra.mxu0 0.0
    %1313 = vmatprep.subr.mxu0 0.0
    %1314 = vmatpush1.msra.mxu0 0.0
    %1315 = vmatprep.subr.mxu0 0.0
    %1316 = vmatpush1.msra.mxu0 0.0
    %1317 = vmatprep.subr.mxu0 0.0
    %1318 = vmatpush1.msra.mxu0 0.0
    %1319 = vmatprep.subr.mxu0 0.0
    %1320 = vmatpush1.msra.mxu0 0.0
    %1321 = vmatprep.subr.mxu0 0.0
    %1322 = vmatpush1.msra.mxu0 0.0
    %1323 = vmatprep.subr.mxu0 0.0
    %1324 = vmatpush1.msra.mxu0 0.0
    %1325 = vmatprep.subr.mxu0 0.0
    %1326 = vmatpush1.msra.mxu0 0.0
    %1327 = vmatprep.subr.mxu0 0.0
    %1328 = vmatpush1.msra.mxu0 0.0
    %1329 = vmatprep.subr.mxu0 0.0
    %1330 = vmatpush1.msra.mxu0 0.0
    %1331 = vmatprep.subr.mxu0 0.0
    %1332 = vmatpush1.msra.mxu0 0.0
    %1333 = vmatprep.subr.mxu0 0.0
    %1334 = vmatpush1.msra.mxu0 0.0
    %1335 = vmatprep.subr.mxu0 0.0
    %1336 = vmatpush1.msra.mxu0 0.0
    %1337 = vmatprep.subr.mxu0 0.0
    %1338 = vmatpush1.msra.mxu0 0.0
    %1339 = vmatprep.subr.mxu0 0.0
    %1340 = vmatpush1.msra.mxu0 0.0
    %1341 = vmatprep.subr.mxu0 0.0
    %1342 = vmatpush1.msra.mxu0 0.0
    %1343 = vmatprep.subr.mxu0 0.0
    %1344 = vmatpush1.msra.mxu0 0.0
    %1345 = vmatprep.subr.mxu0 0.0
    %1346 = vmatpush1.msra.mxu0 0.0
    %1347 = vmatprep.subr.mxu0 0.0
    %1348 = vmatpush1.msra.mxu0 0.0
    %1349 = vmatprep.subr.mxu0 0.0
    %1350 = vmatpush1.msra.mxu0 0.0
    %1351 = vmatprep.subr.mxu0 0.0
    %1352 = vmatpush1.msra.mxu0 0.0
    %1353 = vmatprep.subr.mxu0 0.0
    %1354 = vmatpush1.msra.mxu0 0.0
    %1355 = vmatprep.subr.mxu0 0.0
    %1356 = vmatpush1.msra.mxu0 0.0
    %1357 = vmatprep.subr.mxu0 0.0
    %1358 = vmatpush1.msra.mxu0 0.0
    %1359 = vmatprep.subr.mxu0 0.0
    %1360 = vmatpush1.msra.mxu0 0.0
    %1361 = vmatprep.subr.mxu0 0.0
    %1362 = vmatpush1.msra.mxu0 0.0
    %1363 = vmatprep.mubr.f32.mxu0 0.0
    %1364 = vmatmul.mubr.f32.gmra.mrb[0].mxu0 %v1297
    %v1365 = vpop.f32.mrb[0].mxu0
    %v1366 = vadd.f32 %v1296, %v1365
    %v1367 = vpop.f32.mrb[0].mxu0
    %1368 = vdwg.mxu0
    %v1369 = vxor.u32 %v1366, 2147483648
    %v1370 = vmul.f32 %v1369, 1.442695
    %v1371 = vpow.pop %v1370
    %v1372 = vadd.f32 %v1371, 1.0
    %v1373 = vrcp.pop %v1372
    %v1374 = vmul.f32 1.0, %v1373
    %v1375 = vtanh.pop %v1366
    %v1376 = vmul.f32 %v1374, %v1182
    %1378 = vrot.lane.b32.xlu0 %v1375, 64
    %v1379 = vpop.permute.xlu0 %1378
    %v1381 = vmul.f32 %v1374, %v1379
    %1383 = vrot.lane.b32.xlu0 %v1381, 32
    %v1384 = vpop.permute.xlu0 %1383
    %v1386 = vadd.f32 %v1376, %v1384
    %v1387 = vtanh.pop %v1386
    %1389 = vrot.lane.b32.xlu0 %v1387, 64
    %v1390 = vpop.permute.xlu0 %1389
    %v1392 = vmul.f32 %v1374, %v1390
    %1394 = vrot.lane.b32.xlu0 %v1392, 32
    %v1395 = vpop.permute.xlu0 %1394
    %1398 = vrot.lane.b32.xlu0 %v1294, 64
    %v1399 = vpop.permute.xlu0 %1398
    %v1401 = vsel %vm74, %v1395, %v1399
    %v1403 = vsel %vm177, %v1401, 0
    %1405 = vmatprep.subr.mxu0 0.0
    %1406 = vmatpush1.msra.mxu0 %v64
    %1407 = vmatprep.subr.mxu0 0.0
    %1408 = vmatpush1.msra.mxu0 %v65
    %1409 = vmatprep.subr.mxu0 0.0
    %1410 = vmatpush1.msra.mxu0 %v66
    %1411 = vmatprep.subr.mxu0 0.0
    %1412 = vmatpush1.msra.mxu0 %v67
    %1413 = vmatprep.subr.mxu0 0.0
    %1414 = vmatpush1.msra.mxu0 %v68
    %1415 = vmatprep.subr.mxu0 0.0
    %1416 = vmatpush1.msra.mxu0 %v69
    %1417 = vmatprep.subr.mxu0 0.0
    %1418 = vmatpush1.msra.mxu0 %v70
    %1419 = vmatprep.subr.mxu0 0.0
    %1420 = vmatpush1.msra.mxu0 %v71
    %1421 = vmatprep.subr.mxu0 0.0
    %1422 = vmatpush1.msra.mxu0 0.0
    %1423 = vmatprep.subr.mxu0 0.0
    %1424 = vmatpush1.msra.mxu0 0.0
    %1425 = vmatprep.subr.mxu0 0.0
    %1426 = vmatpush1.msra.mxu0 0.0
    %1427 = vmatprep.subr.mxu0 0.0
    %1428 = vmatpush1.msra.mxu0 0.0
    %1429 = vmatprep.subr.mxu0 0.0
    %1430 = vmatpush1.msra.mxu0 0.0
    %1431 = vmatprep.subr.mxu0 0.0
    %1432 = vmatpush1.msra.mxu0 0.0
    %1433 = vmatprep.subr.mxu0 0.0
    %1434 = vmatpush1.msra.mxu0 0.0
    %1435 = vmatprep.subr.mxu0 0.0
    %1436 = vmatpush1.msra.mxu0 0.0
    %1437 = vmatprep.subr.mxu0 0.0
    %1438 = vmatpush1.msra.mxu0 0.0
    %1439 = vmatprep.subr.mxu0 0.0
    %1440 = vmatpush1.msra.mxu0 0.0
    %1441 = vmatprep.subr.mxu0 0.0
    %1442 = vmatpush1.msra.mxu0 0.0
    %1443 = vmatprep.subr.mxu0 0.0
    %1444 = vmatpush1.msra.mxu0 0.0
    %1445 = vmatprep.subr.mxu0 0.0
    %1446 = vmatpush1.msra.mxu0 0.0
    %1447 = vmatprep.subr.mxu0 0.0
    %1448 = vmatpush1.msra.mxu0 0.0
    %1449 = vmatprep.subr.mxu0 0.0
    %1450 = vmatpush1.msra.mxu0 0.0
    %1451 = vmatprep.subr.mxu0 0.0
    %1452 = vmatpush1.msra.mxu0 0.0
    %1453 = vmatprep.subr.mxu0 0.0
    %1454 = vmatpush1.msra.mxu0 0.0
    %1455 = vmatprep.subr.mxu0 0.0
    %1456 = vmatpush1.msra.mxu0 0.0
    %1457 = vmatprep.subr.mxu0 0.0
    %1458 = vmatpush1.msra.mxu0 0.0
    %1459 = vmatprep.subr.mxu0 0.0
    %1460 = vmatpush1.msra.mxu0 0.0
    %1461 = vmatprep.subr.mxu0 0.0
    %1462 = vmatpush1.msra.mxu0 0.0
    %1463 = vmatprep.subr.mxu0 0.0
    %1464 = vmatpush1.msra.mxu0 0.0
    %1465 = vmatprep.subr.mxu0 0.0
    %1466 = vmatpush1.msra.mxu0 0.0
    %1467 = vmatprep.subr.mxu0 0.0
    %1468 = vmatpush1.msra.mxu0 0.0
    %1469 = vmatprep.mubr.f32.mxu0 0.0
    %1470 = vmatmul.mubr.f32.gmra.mrb[0].mxu0 %v1403
    %v1471 = vpop.f32.mrb[0].mxu0
    %v1472 = vadd.f32 %v72, %v1471
    %v1473 = vpop.f32.mrb[0].mxu0
    %1474 = vdwg.mxu0
    %v1475 = vxor.u32 %v1472, 2147483648
    %v1476 = vmul.f32 %v1475, 1.442695
    %v1477 = vpow.pop %v1476
    %v1478 = vadd.f32 %v1477, 1.0
    %v1479 = vrcp.pop %v1478
    %v1480 = vmul.f32 1.0, %v1479
    %v1481 = vtanh.pop %v1472
    %v1482 = vmul.f32 %v1480, %v1288
    %1484 = vrot.lane.b32.xlu0 %v1481, 64
    %v1485 = vpop.permute.xlu0 %1484
    %v1487 = vmul.f32 %v1480, %v1485
    %1489 = vrot.lane.b32.xlu0 %v1487, 32
    %v1490 = vpop.permute.xlu0 %1489
    %v1492 = vadd.f32 %v1482, %v1490
    %v1493 = vtanh.pop %v1492
    %1495 = vrot.lane.b32.xlu0 %v1493, 64
    %v1496 = vpop.permute.xlu0 %1495
    %v1498 = vmul.f32 %v1480, %v1496
    %s1499 = scalar_lea.vmem [#allocation2], 14
    %v1500 = vld [vmem:[%s1499] sm:$0x3]
    %v1501 = vsel %vm74, %v1395, 0
    %1503 = vmatprep.subr.mxu0 0.0
    %1504 = vmatpush1.msra.mxu0 %v60
    %1505 = vmatprep.subr.mxu0 0.0
    %1506 = vmatpush1.msra.mxu0 %v61
    %1507 = vmatprep.subr.mxu0 0.0
    %1508 = vmatpush1.msra.mxu0 %v62
    %1509 = vmatprep.subr.mxu0 0.0
    %1510 = vmatpush1.msra.mxu0 %v63
    %1511 = vmatprep.subr.mxu0 0.0
    %1512 = vmatpush1.msra.mxu0 0.0
    %1513 = vmatprep.subr.mxu0 0.0
    %1514 = vmatpush1.msra.mxu0 0.0
    %1515 = vmatprep.subr.mxu0 0.0
    %1516 = vmatpush1.msra.mxu0 0.0
    %1517 = vmatprep.subr.mxu0 0.0
    %1518 = vmatpush1.msra.mxu0 0.0
    %1519 = vmatprep.subr.mxu0 0.0
    %1520 = vmatpush1.msra.mxu0 0.0
    %1521 = vmatprep.subr.mxu0 0.0
    %1522 = vmatpush1.msra.mxu0 0.0
    %1523 = vmatprep.subr.mxu0 0.0
    %1524 = vmatpush1.msra.mxu0 0.0
    %1525 = vmatprep.subr.mxu0 0.0
    %1526 = vmatpush1.msra.mxu0 0.0
    %1527 = vmatprep.subr.mxu0 0.0
    %1528 = vmatpush1.msra.mxu0 0.0
    %1529 = vmatprep.subr.mxu0 0.0
    %1530 = vmatpush1.msra.mxu0 0.0
    %1531 = vmatprep.subr.mxu0 0.0
    %1532 = vmatpush1.msra.mxu0 0.0
    %1533 = vmatprep.subr.mxu0 0.0
    %1534 = vmatpush1.msra.mxu0 0.0
    %1535 = vmatprep.subr.mxu0 0.0
    %1536 = vmatpush1.msra.mxu0 0.0
    %1537 = vmatprep.subr.mxu0 0.0
    %1538 = vmatpush1.msra.mxu0 0.0
    %1539 = vmatprep.subr.mxu0 0.0
    %1540 = vmatpush1.msra.mxu0 0.0
    %1541 = vmatprep.subr.mxu0 0.0
    %1542 = vmatpush1.msra.mxu0 0.0
    %1543 = vmatprep.subr.mxu0 0.0
    %1544 = vmatpush1.msra.mxu0 0.0
    %1545 = vmatprep.subr.mxu0 0.0
    %1546 = vmatpush1.msra.mxu0 0.0
    %1547 = vmatprep.subr.mxu0 0.0
    %1548 = vmatpush1.msra.mxu0 0.0
    %1549 = vmatprep.subr.mxu0 0.0
    %1550 = vmatpush1.msra.mxu0 0.0
    %1551 = vmatprep.subr.mxu0 0.0
    %1552 = vmatpush1.msra.mxu0 0.0
    %1553 = vmatprep.subr.mxu0 0.0
    %1554 = vmatpush1.msra.mxu0 0.0
    %1555 = vmatprep.subr.mxu0 0.0
    %1556 = vmatpush1.msra.mxu0 0.0
    %1557 = vmatprep.subr.mxu0 0.0
    %1558 = vmatpush1.msra.mxu0 0.0
    %1559 = vmatprep.subr.mxu0 0.0
    %1560 = vmatpush1.msra.mxu0 0.0
    %1561 = vmatprep.subr.mxu0 0.0
    %1562 = vmatpush1.msra.mxu0 0.0
    %1563 = vmatprep.subr.mxu0 0.0
    %1564 = vmatpush1.msra.mxu0 0.0
    %1565 = vmatprep.subr.mxu0 0.0
    %1566 = vmatpush1.msra.mxu0 0.0
    %1567 = vmatprep.mubr.f32.mxu0 0.0
    %1568 = vmatmul.mubr.f32.gmra.mrb[0].mxu0 %v1501
    %v1569 = vpop.f32.mrb[0].mxu0
    %v1570 = vadd.f32 %v1500, %v1569
    %v1571 = vpop.f32.mrb[0].mxu0
    %1572 = vdwg.mxu0
    %v1573 = vxor.u32 %v1570, 2147483648
    %v1574 = vmul.f32 %v1573, 1.442695
    %v1575 = vpow.pop %v1574
    %v1576 = vadd.f32 %v1575, 1.0
    %v1577 = vrcp.pop %v1576
    %v1578 = vmul.f32 1.0, %v1577
    %v1579 = vtanh.pop %v1570
    %v1580 = vmul.f32 %v1578, %v1386
    %1582 = vrot.lane.b32.xlu0 %v1579, 64
    %v1583 = vpop.permute.xlu0 %1582
    %v1585 = vmul.f32 %v1578, %v1583
    %1587 = vrot.lane.b32.xlu0 %v1585, 32
    %v1588 = vpop.permute.xlu0 %1587
    %v1590 = vadd.f32 %v1580, %v1588
    %v1591 = vtanh.pop %v1590
    %1593 = vrot.lane.b32.xlu0 %v1591, 64
    %v1594 = vpop.permute.xlu0 %1593
    %v1596 = vmul.f32 %v1578, %v1594
    %1598 = vrot.lane.b32.xlu0 %v1596, 32
    %v1599 = vpop.permute.xlu0 %1598
    %1602 = vrot.lane.b32.xlu0 %v1498, 64
    %v1603 = vpop.permute.xlu0 %1602
    %v1605 = vsel %vm74, %v1599, %v1603
    %v1607 = vsel %vm177, %v1605, 0
    %1609 = vmatprep.subr.mxu0 0.0
    %1610 = vmatpush1.msra.mxu0 %v64
    %1611 = vmatprep.subr.mxu0 0.0
    %1612 = vmatpush1.msra.mxu0 %v65
    %1613 = vmatprep.subr.mxu0 0.0
    %1614 = vmatpush1.msra.mxu0 %v66
    %1615 = vmatprep.subr.mxu0 0.0
    %1616 = vmatpush1.msra.mxu0 %v67
    %1617 = vmatprep.subr.mxu0 0.0
    %1618 = vmatpush1.msra.mxu0 %v68
    %1619 = vmatprep.subr.mxu0 0.0
    %1620 = vmatpush1.msra.mxu0 %v69
    %1621 = vmatprep.subr.mxu0 0.0
    %1622 = vmatpush1.msra.mxu0 %v70
    %1623 = vmatprep.subr.mxu0 0.0
    %1624 = vmatpush1.msra.mxu0 %v71
    %1625 = vmatprep.subr.mxu0 0.0
    %1626 = vmatpush1.msra.mxu0 0.0
    %1627 = vmatprep.subr.mxu0 0.0
    %1628 = vmatpush1.msra.mxu0 0.0
    %1629 = vmatprep.subr.mxu0 0.0
    %1630 = vmatpush1.msra.mxu0 0.0
    %1631 = vmatprep.subr.mxu0 0.0
    %1632 = vmatpush1.msra.mxu0 0.0
    %1633 = vmatprep.subr.mxu0 0.0
    %1634 = vmatpush1.msra.mxu0 0.0
    %1635 = vmatprep.subr.mxu0 0.0
    %1636 = vmatpush1.msra.mxu0 0.0
    %1637 = vmatprep.subr.mxu0 0.0
    %1638 = vmatpush1.msra.mxu0 0.0
    %1639 = vmatprep.subr.mxu0 0.0
    %1640 = vmatpush1.msra.mxu0 0.0
    %1641 = vmatprep.subr.mxu0 0.0
    %1642 = vmatpush1.msra.mxu0 0.0
    %1643 = vmatprep.subr.mxu0 0.0
    %1644 = vmatpush1.msra.mxu0 0.0
    %1645 = vmatprep.subr.mxu0 0.0
    %1646 = vmatpush1.msra.mxu0 0.0
    %1647 = vmatprep.subr.mxu0 0.0
    %1648 = vmatpush1.msra.mxu0 0.0
    %1649 = vmatprep.subr.mxu0 0.0
    %1650 = vmatpush1.msra.mxu0 0.0
    %1651 = vmatprep.subr.mxu0 0.0
    %1652 = vmatpush1.msra.mxu0 0.0
    %1653 = vmatprep.subr.mxu0 0.0
    %1654 = vmatpush1.msra.mxu0 0.0
    %1655 = vmatprep.subr.mxu0 0.0
    %1656 = vmatpush1.msra.mxu0 0.0
    %1657 = vmatprep.subr.mxu0 0.0
    %1658 = vmatpush1.msra.mxu0 0.0
    %1659 = vmatprep.subr.mxu0 0.0
    %1660 = vmatpush1.msra.mxu0 0.0
    %1661 = vmatprep.subr.mxu0 0.0
    %1662 = vmatpush1.msra.mxu0 0.0
    %1663 = vmatprep.subr.mxu0 0.0
    %1664 = vmatpush1.msra.mxu0 0.0
    %1665 = vmatprep.subr.mxu0 0.0
    %1666 = vmatpush1.msra.mxu0 0.0
    %1667 = vmatprep.subr.mxu0 0.0
    %1668 = vmatpush1.msra.mxu0 0.0
    %1669 = vmatprep.subr.mxu0 0.0
    %1670 = vmatpush1.msra.mxu0 0.0
    %1671 = vmatprep.subr.mxu0 0.0
    %1672 = vmatpush1.msra.mxu0 0.0
    %1673 = vmatprep.mubr.f32.mxu0 0.0
    %1674 = vmatmul.mubr.f32.gmra.mrb[0].mxu0 %v1607
    %v1675 = vpop.f32.mrb[0].mxu0
    %v1676 = vadd.f32 %v72, %v1675
    %v1677 = vpop.f32.mrb[0].mxu0
    %1678 = vdwg.mxu0
    %v1679 = vxor.u32 %v1676, 2147483648
    %v1680 = vmul.f32 %v1679, 1.442695
    %v1681 = vpow.pop %v1680
    %v1682 = vadd.f32 %v1681, 1.0
    %v1683 = vrcp.pop %v1682
    %v1684 = vmul.f32 1.0, %v1683
    %v1685 = vtanh.pop %v1676
    %v1686 = vmul.f32 %v1684, %v1492
    %1688 = vrot.lane.b32.xlu0 %v1685, 64
    %v1689 = vpop.permute.xlu0 %1688
    %v1691 = vmul.f32 %v1684, %v1689
    %1693 = vrot.lane.b32.xlu0 %v1691, 32
    %v1694 = vpop.permute.xlu0 %1693
    %v1696 = vadd.f32 %v1686, %v1694
    %v1697 = vtanh.pop %v1696
    %1699 = vrot.lane.b32.xlu0 %v1697, 64
    %v1700 = vpop.permute.xlu0 %1699
    %v1702 = vmul.f32 %v1684, %v1700
    %v1703 = vrot.slane %v478, 6
    %v1705 = vrot.slane %v682, 4
    %v1707 = vrot.slane %v886, 2
    %v1709 = vrot.slane %v1294, 6
    %v1711 = vrot.slane %v1498, 4
    %v1714 = vrot.slane %v1702, 2
    %vm1716 = vcmask 1041408
    %v1717 = vsel %vm1716, %v274, %v1703
    %vm1718 = vcmask 1043456
    %v1719 = vsel %vm1718, %v1717, %v1705
    %vm1720 = vcmask 1045504
    %v1721 = vsel %vm1720, %v1719, %v1707
    %v1722 = vsel %vm1716, %v1090, %v1709
    %v1723 = vsel %vm1718, %v1722, %v1711
    %v1724 = vsel %vm1720, %v1723, %v1714
    %v1725 = vld [vmem:[%s4] sm:$0xff]
    %v1726 = vld [vmem:[%s4 + $0x8] sm:$0xff]
    %v1727 = vld [vmem:[%s4 + $0x10] sm:$0xff]
    %v1728 = vld [vmem:[%s4 + $0x18] sm:$0xff]
    %v1729 = vld [vmem:[%s5] sm:$0x1]
    %v1731 = vlaneseq
    %v1732 = vshrl.u32 %v1731, 7
    %v1733 = vsub.s32 0, %v1732
    %v1734 = vrot.slane %v1729, %v1733
    %1738 = vrot.lane.b32.xlu0 %v1721, 32
    %v1739 = vpop.permute.xlu0 %1738
    %1740 = vrot.lane.b32.xlu0 %v1724, 32
    %v1741 = vpop.permute.xlu0 %1740
    %v1742 = vsel %vm74, %v1739, 0
    %v1744 = vsel %vm74, %v1741, 0
    %1746 = vmatprep.subr.mxu0 0.0
    %1747 = vmatpush1.msra.mxu0 %v1725
    %1748 = vmatprep.subr.mxu0 0.0
    %1749 = vmatpush1.msra.mxu0 %v1726
    %1750 = vmatprep.subr.mxu0 0.0
    %1751 = vmatpush1.msra.mxu0 %v1727
    %1752 = vmatprep.subr.mxu0 0.0
    %1753 = vmatpush1.msra.mxu0 %v1728
    %1754 = vmatprep.subr.mxu0 0.0
    %1755 = vmatpush1.msra.mxu0 0.0
    %1756 = vmatprep.subr.mxu0 0.0
    %1757 = vmatpush1.msra.mxu0 0.0
    %1758 = vmatprep.subr.mxu0 0.0
    %1759 = vmatpush1.msra.mxu0 0.0
    %1760 = vmatprep.subr.mxu0 0.0
    %1761 = vmatpush1.msra.mxu0 0.0
    %1762 = vmatprep.subr.mxu0 0.0
    %1763 = vmatpush1.msra.mxu0 0.0
    %1764 = vmatprep.subr.mxu0 0.0
    %1765 = vmatpush1.msra.mxu0 0.0
    %1766 = vmatprep.subr.mxu0 0.0
    %1767 = vmatpush1.msra.mxu0 0.0
    %1768 = vmatprep.subr.mxu0 0.0
    %1769 = vmatpush1.msra.mxu0 0.0
    %1770 = vmatprep.subr.mxu0 0.0
    %1771 = vmatpush1.msra.mxu0 0.0
    %1772 = vmatprep.subr.mxu0 0.0
    %1773 = vmatpush1.msra.mxu0 0.0
    %1774 = vmatprep.subr.mxu0 0.0
    %1775 = vmatpush1.msra.mxu0 0.0
    %1776 = vmatprep.subr.mxu0 0.0
    %1777 = vmatpush1.msra.mxu0 0.0
    %1778 = vmatprep.subr.mxu0 0.0
    %1779 = vmatpush1.msra.mxu0 0.0
    %1780 = vmatprep.subr.mxu0 0.0
    %1781 = vmatpush1.msra.mxu0 0.0
    %1782 = vmatprep.subr.mxu0 0.0
    %1783 = vmatpush1.msra.mxu0 0.0
    %1784 = vmatprep.subr.mxu0 0.0
    %1785 = vmatpush1.msra.mxu0 0.0
    %1786 = vmatprep.subr.mxu0 0.0
    %1787 = vmatpush1.msra.mxu0 0.0
    %1788 = vmatprep.subr.mxu0 0.0
    %1789 = vmatpush1.msra.mxu0 0.0
    %1790 = vmatprep.subr.mxu0 0.0
    %1791 = vmatpush1.msra.mxu0 0.0
    %1792 = vmatprep.subr.mxu0 0.0
    %1793 = vmatpush1.msra.mxu0 0.0
    %1794 = vmatprep.subr.mxu0 0.0
    %1795 = vmatpush1.msra.mxu0 0.0
    %1796 = vmatprep.subr.mxu0 0.0
    %1797 = vmatpush1.msra.mxu0 0.0
    %1798 = vmatprep.subr.mxu0 0.0
    %1799 = vmatpush1.msra.mxu0 0.0
    %1800 = vmatprep.subr.mxu0 0.0
    %1801 = vmatpush1.msra.mxu0 0.0
    %1802 = vmatprep.subr.mxu0 0.0
    %1803 = vmatpush1.msra.mxu0 0.0
    %1804 = vmatprep.subr.mxu0 0.0
    %1805 = vmatpush1.msra.mxu0 0.0
    %1806 = vmatprep.subr.mxu0 0.0
    %1807 = vmatpush1.msra.mxu0 0.0
    %1808 = vmatprep.subr.mxu0 0.0
    %1809 = vmatpush1.msra.mxu0 0.0
    %1810 = vmatprep.mubr.f32.mxu0 0.0
    %1811 = vmatmul.mubr.f32.gmra.mrb[0].mxu0 %v1742
    %v1812 = vpop.f32.mrb[0].mxu0
    %v1813 = vadd.f32 %v1734, %v1812
    %v1814 = vpop.f32.mrb[0].mxu0
    %1815 = vmatprep.mubr.f32.mxu0 0.0
    %1816 = vmatmul.mubr.f32.gmra.mrb[0].mxu0 %v1744
    %v1817 = vpop.f32.mrb[0].mxu0
    %v1818 = vadd.f32 %v1734, %v1817
    %v1819 = vpop.f32.mrb[0].mxu0
    %1820 = vdwg.mxu0
    %vm1821 = vcmask 31744
    %1822 = vst.msk [vmem:[%s8] sm:$0xff] %vm1821, %v1813
    %1823 = vst.msk [vmem:[%s8 + $0x8] sm:$0xff] %vm1821, %v1818
    %v1824 = vld [vmem:[%s6] sm:$0xff]
    %v1825 = vld [vmem:[%s6 + $0x8] sm:$0xff]
    %v1826 = vld [vmem:[%s6 + $0x10] sm:$0xff]
    %v1827 = vld [vmem:[%s6 + $0x18] sm:$0xff]
    %v1828 = vld [vmem:[%s7] sm:$0x1]
    %v1830 = vlaneseq
    %v1831 = vshrl.u32 %v1830, 7
    %v1832 = vsub.s32 0, %v1831
    %v1833 = vrot.slane %v1828, %v1832
    %1835 = vrot.lane.b32.xlu0 %v1702, 32
    %v1836 = vpop.permute.xlu0 %1835
    %v1837 = vsel %vm74, %v1836, 0
    %1839 = vmatprep.subr.mxu0 0.0
    %1840 = vmatpush1.msra.mxu0 %v1824
    %1841 = vmatprep.subr.mxu0 0.0
    %1842 = vmatpush1.msra.mxu0 %v1825
    %1843 = vmatprep.subr.mxu0 0.0
    %1844 = vmatpush1.msra.mxu0 %v1826
    %1845 = vmatprep.subr.mxu0 0.0
    %1846 = vmatpush1.msra.mxu0 %v1827
    %1847 = vmatprep.subr.mxu0 0.0
    %1848 = vmatpush1.msra.mxu0 0.0
    %1849 = vmatprep.subr.mxu0 0.0
    %1850 = vmatpush1.msra.mxu0 0.0
    %1851 = vmatprep.subr.mxu0 0.0
    %1852 = vmatpush1.msra.mxu0 0.0
    %1853 = vmatprep.subr.mxu0 0.0
    %1854 = vmatpush1.msra.mxu0 0.0
    %1855 = vmatprep.subr.mxu0 0.0
    %1856 = vmatpush1.msra.mxu0 0.0
    %1857 = vmatprep.subr.mxu0 0.0
    %1858 = vmatpush1.msra.mxu0 0.0
    %1859 = vmatprep.subr.mxu0 0.0
    %1860 = vmatpush1.msra.mxu0 0.0
    %1861 = vmatprep.subr.mxu0 0.0
    %1862 = vmatpush1.msra.mxu0 0.0
    %1863 = vmatprep.subr.mxu0 0.0
    %1864 = vmatpush1.msra.mxu0 0.0
    %1865 = vmatprep.subr.mxu0 0.0
    %1866 = vmatpush1.msra.mxu0 0.0
    %1867 = vmatprep.subr.mxu0 0.0
    %1868 = vmatpush1.msra.mxu0 0.0
    %1869 = vmatprep.subr.mxu0 0.0
    %1870 = vmatpush1.msra.mxu0 0.0
    %1871 = vmatprep.subr.mxu0 0.0
    %1872 = vmatpush1.msra.mxu0 0.0
    %1873 = vmatprep.subr.mxu0 0.0
    %1874 = vmatpush1.msra.mxu0 0.0
    %1875 = vmatprep.subr.mxu0 0.0
    %1876 = vmatpush1.msra.mxu0 0.0
    %1877 = vmatprep.subr.mxu0 0.0
    %1878 = vmatpush1.msra.mxu0 0.0
    %1879 = vmatprep.subr.mxu0 0.0
    %1880 = vmatpush1.msra.mxu0 0.0
    %1881 = vmatprep.subr.mxu0 0.0
    %1882 = vmatpush1.msra.mxu0 0.0
    %1883 = vmatprep.subr.mxu0 0.0
    %1884 = vmatpush1.msra.mxu0 0.0
    %1885 = vmatprep.subr.mxu0 0.0
    %1886 = vmatpush1.msra.mxu0 0.0
    %1887 = vmatprep.subr.mxu0 0.0
    %1888 = vmatpush1.msra.mxu0 0.0
    %1889 = vmatprep.subr.mxu0 0.0
    %1890 = vmatpush1.msra.mxu0 0.0
    %1891 = vmatprep.subr.mxu0 0.0
    %1892 = vmatpush1.msra.mxu0 0.0
    %1893 = vmatprep.subr.mxu0 0.0
    %1894 = vmatpush1.msra.mxu0 0.0
    %1895 = vmatprep.subr.mxu0 0.0
    %1896 = vmatpush1.msra.mxu0 0.0
    %1897 = vmatprep.subr.mxu0 0.0
    %1898 = vmatpush1.msra.mxu0 0.0
    %1899 = vmatprep.subr.mxu0 0.0
    %1900 = vmatpush1.msra.mxu0 0.0
    %1901 = vmatprep.subr.mxu0 0.0
    %1902 = vmatpush1.msra.mxu0 0.0
    %1903 = vmatprep.mubr.f32.mxu0 0.0
    %1904 = vmatmul.mubr.f32.gmra.mrb[0].mxu0 %v1837
    %v1905 = vpop.f32.mrb[0].mxu0
    %v1906 = vadd.f32 %v1833, %v1905
    %v1907 = vpop.f32.mrb[0].mxu0
    %1908 = vdwg.mxu0
    %vm1909 = vcmask 17408
    %1910 = vst.msk [vmem:[#allocation7] sm:$0x3] %vm1909, %v1906
    // Predicated region
    $region42: #{tpu_custom_call.1} parent=1 // pred_check
      _
    $region43: #{tpu_custom_call.1} parent=1 // pred_check_branch
      %1912 = sbr.rel (0) target = $region45
    $region44: #{tpu_custom_call.1} parent=1 // pred_region
      _
    $region45: #{tpu_custom_call.1} parent=1 // pred_fallthru
      _
    // Predicated region
    $region46: #{tpu_custom_call.1} parent=1 // pred_check
      _
    $region47: #{tpu_custom_call.1} parent=1 // pred_check_branch
      %1914 = sbr.rel (0) target = $region49
    $region48: #{tpu_custom_call.1} parent=1 // pred_region
      %s1916 = ssub.s32 32, 32
      %1917 = vsyncadd [#allocation4], %s1916
      %s1919 = sshll.u32 [#allocation7], 4
      %s1920 = int_to_ptr.vmem [resolvable:$true] %s1919
      %1922 = dma.vmem_to_hbm [thread:$0]  %s1920, 32, %s9, [#allocation4]
    $region49: #{tpu_custom_call.1} parent=1 // pred_fallthru
      _
    // Predicated region
    $region50: #{tpu_custom_call.1} parent=1 // pred_check
      _
    $region51: #{tpu_custom_call.1} parent=1 // pred_check_branch
      %1924 = sbr.rel (0) target = $region53
    $region52: #{tpu_custom_call.1} parent=1 // pred_region
      _
    $region53: #{tpu_custom_call.1} parent=1 // pred_fallthru
      _
    // Predicated region
    $region54: #{tpu_custom_call.1} parent=1 // pred_check
      _
    $region55: #{tpu_custom_call.1} parent=1 // pred_check_branch
      %1926 = sbr.rel (0) target = $region57
    $region56: #{tpu_custom_call.1} parent=1 // pred_region
      %1927 = dma.done [#allocation4], 32
    $region57: #{tpu_custom_call.1} parent=1 // pred_fallthru
      _
    %1928 = vsyncpa [#allocation3], 1
    %1929 = vsyncpa [#allocation6], 1
    %1930 = vsyncpa [#allocation4], 1

</llo_original>
